<compile_context>
chip_gen: v6e
topology: v6e:2x2x1
jax: 0.10.0
libtpu: 0.0.40
codegen_flags: <defaults>
</compile_context>

<pallas_src>
import functools

import jax
import jax.numpy as jnp
from jax.experimental import pallas as pl
from jax.experimental.pallas import tpu as pltpu

IN_DIM, HID_DIM, CNT = 200, 300, 16      # logical (PyTorch) sizes; CNT synthetic (cnt==0)
IN_P, HID_P, CNT_P = 256, 384, 128       # lane-padded sizes used by the kernels


def _round_up(n, m):
    return ((n + m - 1) // m) * m


# --------------------------------------------------------------------------------------
# Kernel 1: batch-tiled MLP -> padded logits (f32). Weights stay resident across the grid.
# --------------------------------------------------------------------------------------
def _mlp_logits_kernel(x_ref, w1_ref, b1_ref, w2_ref, b2_ref, w3_ref, b3_ref, o_ref):
    x = x_ref[...]                                                            # (TB, IN_P) bf16
    h1 = jnp.dot(x, w1_ref[...], preferred_element_type=jnp.float32) + b1_ref[...]
    h1 = jnp.maximum(h1, 0.0).astype(jnp.bfloat16)
    h2 = jnp.dot(h1, w2_ref[...], preferred_element_type=jnp.float32) + b2_ref[...]
    h2 = jnp.maximum(h2, 0.0).astype(jnp.bfloat16)
    o_ref[...] = jnp.dot(h2, w3_ref[...], preferred_element_type=jnp.float32) + b3_ref[...]


# --------------------------------------------------------------------------------------
# Kernel 2: online logsumexp over the batch axis (dim=0), masking padded batch rows.
# --------------------------------------------------------------------------------------
def _lse_kernel(logits_ref, lse_ref, m_sc, s_sc, *, batch, tb):
    i = pl.program_id(0)

    @pl.when(i == 0)
    def _():
        m_sc[...] = jnp.full_like(m_sc, -jnp.inf)
        s_sc[...] = jnp.zeros_like(s_sc)

    rows = i * tb + jax.lax.broadcasted_iota(jnp.int32, (tb, 1), 0)
    z = jnp.where(rows < batch, logits_ref[...], -jnp.inf)                    # mask pad rows

    m_prev = m_sc[...]
    m_new = jnp.maximum(m_prev, jnp.max(z, axis=0, keepdims=True))
    s_sc[...] = (s_sc[...] * jnp.exp(m_prev - m_new)
                 + jnp.sum(jnp.exp(z - m_new), axis=0, keepdims=True))
    m_sc[...] = m_new

    @pl.when(i == pl.num_programs(0) - 1)
    def _():
        lse_ref[...] = m_sc[...] + jnp.log(s_sc[...])


# --------------------------------------------------------------------------------------
# Kernel 3: subtract the per-class logsumexp (broadcast over the batch tile).
# --------------------------------------------------------------------------------------
def _normalize_kernel(logits_ref, lse_ref, o_ref):
    o_ref[...] = logits_ref[...] - lse_ref[...]


# --------------------------------------------------------------------------------------
# Wrapper
# --------------------------------------------------------------------------------------
def models_forward(x, params, *, tb=128):
    """x: (B, 200) f32. params: prepared (padded bf16 weights, f32 biases). -> (B, CNT) f32."""
    w1, b1, w2, b2, w3, b3 = params
    B = x.shape[0]
    tb = min(tb, _round_up(B, 8))
    b_pad = _round_up(B, tb)
    nb = b_pad // tb

    # Pad batch and feature dims; cast activations to bf16.
    xp = jnp.zeros((b_pad, IN_P), jnp.bfloat16).at[:B, :IN_DIM].set(x.astype(jnp.bfloat16))

    const = lambda i: (0, 0)   # resident block (weights / biases / lse)
    row = lambda i: (i, 0)     # streamed batch tile

    flops = 2 * b_pad * (IN_P * HID_P + HID_P * HID_P + HID_P * CNT_P)
    bytes_accessed = (xp.size * 2 + (w1.size + w2.size + w3.size) * 2
                      + (b1.size + b2.size + b3.size) * 4 + b_pad * CNT_P * 4)

    logits = pl.pallas_call(
        _mlp_logits_kernel,
        out_shape=jax.ShapeDtypeStruct((b_pad, CNT_P), jnp.float32),
        grid=(nb,),
        in_specs=[
            pl.BlockSpec((tb, IN_P), row),
            pl.BlockSpec((IN_P, HID_P), const),
            pl.BlockSpec((1, HID_P), const),
            pl.BlockSpec((HID_P, HID_P), const),
            pl.BlockSpec((1, HID_P), const),
            pl.BlockSpec((HID_P, CNT_P), const),
            pl.BlockSpec((1, CNT_P), const),
        ],
        out_specs=pl.BlockSpec((tb, CNT_P), row),
        compiler_params=pltpu.CompilerParams(dimension_semantics=("parallel",)),
        cost_estimate=pl.CostEstimate(flops=flops, transcendentals=0,
                                      bytes_accessed=bytes_accessed),
    )(xp, w1, b1, w2, b2, w3, b3)

    lse = pl.pallas_call(
        functools.partial(_lse_kernel, batch=B, tb=tb),
        out_shape=jax.ShapeDtypeStruct((1, CNT_P), jnp.float32),
        grid=(nb,),
        in_specs=[pl.BlockSpec((tb, CNT_P), row)],
        out_specs=pl.BlockSpec((1, CNT_P), const),
        scratch_shapes=[pltpu.VMEM((1, CNT_P), jnp.float32),
                        pltpu.VMEM((1, CNT_P), jnp.float32)],
        compiler_params=pltpu.CompilerParams(dimension_semantics=("arbitrary",)),
    )(logits)

    out = pl.pallas_call(
        _normalize_kernel,
        out_shape=jax.ShapeDtypeStruct((b_pad, CNT_P), jnp.float32),
        grid=(nb,),
        in_specs=[pl.BlockSpec((tb, CNT_P), row),
                  pl.BlockSpec((1, CNT_P), const)],
        out_specs=pl.BlockSpec((tb, CNT_P), row),
        compiler_params=pltpu.CompilerParams(dimension_semantics=("parallel",)),
    )(logits, lse)

    return out[:B, :CNT]


# --------------------------------------------------------------------------------------
# Params: PyTorch-style init, then pad + cast for the kernels
# --------------------------------------------------------------------------------------
def init_params(key):
    """Deterministic PyTorch-style init: U(-1/sqrt(fan_in), 1/sqrt(fan_in)); stored as (in, out)."""
    def linear(k, fan_in, fan_out):
        kw, kb = jax.random.split(k)
        bound = 1.0 / jnp.sqrt(fan_in)
        w = jax.random.uniform(kw, (fan_in, fan_out), jnp.float32, -bound, bound)
        b = jax.random.uniform(kb, (fan_out,), jnp.float32, -bound, bound)
        return w, b

    k1, k2, k3 = jax.random.split(key, 3)
    w1, b1 = linear(k1, IN_DIM, HID_DIM)
    w2, b2 = linear(k2, HID_DIM, HID_DIM)
    w3, b3 = linear(k3, HID_DIM, CNT)
    return w1, b1, w2, b2, w3, b3


def prepare_params(params):
    """Zero-pad to lane-aligned shapes; weights -> bf16, biases -> f32 (1, F)."""
    w1, b1, w2, b2, w3, b3 = params

    def padw(w, r, c):
        return jnp.zeros((r, c), jnp.bfloat16).at[:w.shape[0], :w.shape[1]].set(
            w.astype(jnp.bfloat16))

    def padb(b, c):
        return jnp.zeros((1, c), jnp.float32).at[0, :b.shape[0]].set(b)

    return (padw(w1, IN_P, HID_P), padb(b1, HID_P),
            padw(w2, HID_P, HID_P), padb(b2, HID_P),
            padw(w3, HID_P, CNT_P), padb(b3, CNT_P))


def reference_forward(x, prepared):
    """Pure-JAX reference with the same bf16 rounding; LogSoftmax over dim=0 on real rows."""
    w1, b1, w2, b2, w3, b3 = prepared
    B = x.shape[0]
    xp = jnp.zeros((B, IN_P), jnp.float32).at[:, :IN_DIM].set(x)
    xp = xp.astype(jnp.bfloat16).astype(jnp.float32)
    f32 = lambda a: a.astype(jnp.float32)
    h1 = jnp.maximum(xp @ f32(w1) + b1, 0.0).astype(jnp.bfloat16).astype(jnp.float32)
    h2 = jnp.maximum(h1 @ f32(w2) + b2, 0.0).astype(jnp.bfloat16).astype(jnp.float32)
    logits = h2 @ f32(w3) + b3
    return jax.nn.log_softmax(logits, axis=0)[:, :CNT]


if __name__ == "__main__":
    key = jax.random.PRNGKey(0)
    kx, kp = jax.random.split(key)

    B = 200  # not a multiple of the 128-row batch tile -> exercises padded-row masking
    x = jax.random.normal(kx, (B, IN_DIM), jnp.float32)
    params = prepare_params(init_params(kp))

    out = jax.block_until_ready(models_forward(x, params))
    ref = reference_forward(x, params)

    assert out.shape == (B, CNT)
    assert jnp.allclose(out, ref, atol=2e-2, rtol=2e-2), (
        "mismatch vs JAX reference, max abs err = %f" % float(jnp.max(jnp.abs(out - ref))))

    print("KERNEL_OK")
</pallas_src>

<mosaic_0001>
module attributes {stable_mosaic.version = 11 : i64} {
  func.func @_mlp_logits_kernel(%arg0: i32, %arg1: memref<128x256xbf16, #tpu.memory_space<vmem>>, %arg2: memref<256x384xbf16, #tpu.memory_space<vmem>>, %arg3: memref<1x384xf32, #tpu.memory_space<vmem>>, %arg4: memref<384x384xbf16, #tpu.memory_space<vmem>>, %arg5: memref<1x384xf32, #tpu.memory_space<vmem>>, %arg6: memref<384x128xbf16, #tpu.memory_space<vmem>>, %arg7: memref<1x128xf32, #tpu.memory_space<vmem>>, %arg8: memref<128x128xf32, #tpu.memory_space<vmem>>) attributes {dimension_semantics = [#tpu.dimension_semantics<parallel>], iteration_bounds = array<i64: 2>, scalar_prefetch = 0 : i64, scratch_operands = 0 : i64, tpu.core_type = #tpu.core_type<tc>, window_params = [{transform_indices = @transform_0, window_bounds = array<i64: 128, 256>}, {pipeline_mode = #tpu.pipeline_mode<synchronous>, transform_indices = @transform_1, window_bounds = array<i64: 256, 384>}, {pipeline_mode = #tpu.pipeline_mode<synchronous>, transform_indices = @transform_2, window_bounds = array<i64: 1, 384>}, {pipeline_mode = #tpu.pipeline_mode<synchronous>, transform_indices = @transform_3, window_bounds = array<i64: 384, 384>}, {pipeline_mode = #tpu.pipeline_mode<synchronous>, transform_indices = @transform_4, window_bounds = array<i64: 1, 384>}, {pipeline_mode = #tpu.pipeline_mode<synchronous>, transform_indices = @transform_5, window_bounds = array<i64: 384, 128>}, {pipeline_mode = #tpu.pipeline_mode<synchronous>, transform_indices = @transform_6, window_bounds = array<i64: 1, 128>}, {transform_indices = @transform_7, window_bounds = array<i64: 128, 128>}]} {
    %c0 = arith.constant 0 : index
    %c0_0 = arith.constant 0 : index
    %0 = vector.load %arg1[%c0, %c0_0] : memref<128x256xbf16, #tpu.memory_space<vmem>>, vector<128x256xbf16>
    %c0_1 = arith.constant 0 : index
    %c0_2 = arith.constant 0 : index
    %1 = vector.load %arg2[%c0_1, %c0_2] : memref<256x384xbf16, #tpu.memory_space<vmem>>, vector<256x384xbf16>
    %cst = arith.constant dense<0.000000e+00> : vector<128x384xf32>
    %2 = tpu.matmul %0, %1, %cst {dimension_numbers = #tpu.dot_dimension_numbers<[1], [0], [0], [1], [0, 0, 1, 1], [], []>} : vector<128x256xbf16>, vector<256x384xbf16>, vector<128x384xf32> -> vector<128x384xf32>
    %c0_3 = arith.constant 0 : index
    %c0_4 = arith.constant 0 : index
    %3 = vector.load %arg3[%c0_3, %c0_4] : memref<1x384xf32, #tpu.memory_space<vmem>>, vector<1x384xf32>
    %4 = vector.broadcast %3 : vector<1x384xf32> to vector<128x384xf32>
    %5 = arith.addf %2, %4 : vector<128x384xf32>
    %cst_5 = arith.constant 0.000000e+00 : f32
    %6 = vector.broadcast %cst_5 : f32 to vector<128x384xf32>
    %7 = arith.maximumf %5, %6 : vector<128x384xf32>
    %8 = arith.truncf %7 : vector<128x384xf32> to vector<128x384xbf16>
    %c0_6 = arith.constant 0 : index
    %c0_7 = arith.constant 0 : index
    %9 = vector.load %arg4[%c0_6, %c0_7] : memref<384x384xbf16, #tpu.memory_space<vmem>>, vector<384x384xbf16>
    %cst_8 = arith.constant dense<0.000000e+00> : vector<128x384xf32>
    %10 = tpu.matmul %8, %9, %cst_8 {dimension_numbers = #tpu.dot_dimension_numbers<[1], [0], [0], [1], [0, 0, 1, 1], [], []>} : vector<128x384xbf16>, vector<384x384xbf16>, vector<128x384xf32> -> vector<128x384xf32>
    %c0_9 = arith.constant 0 : index
    %c0_10 = arith.constant 0 : index
    %11 = vector.load %arg5[%c0_9, %c0_10] : memref<1x384xf32, #tpu.memory_space<vmem>>, vector<1x384xf32>
    %12 = vector.broadcast %11 : vector<1x384xf32> to vector<128x384xf32>
    %13 = arith.addf %10, %12 : vector<128x384xf32>
    %cst_11 = arith.constant 0.000000e+00 : f32
    %14 = vector.broadcast %cst_11 : f32 to vector<128x384xf32>
    %15 = arith.maximumf %13, %14 : vector<128x384xf32>
    %16 = arith.truncf %15 : vector<128x384xf32> to vector<128x384xbf16>
    %c0_12 = arith.constant 0 : index
    %c0_13 = arith.constant 0 : index
    %17 = vector.load %arg6[%c0_12, %c0_13] : memref<384x128xbf16, #tpu.memory_space<vmem>>, vector<384x128xbf16>
    %cst_14 = arith.constant dense<0.000000e+00> : vector<128x128xf32>
    %18 = tpu.matmul %16, %17, %cst_14 {dimension_numbers = #tpu.dot_dimension_numbers<[1], [0], [0], [1], [0, 0, 1, 1], [], []>} : vector<128x384xbf16>, vector<384x128xbf16>, vector<128x128xf32> -> vector<128x128xf32>
    %c0_15 = arith.constant 0 : index
    %c0_16 = arith.constant 0 : index
    %19 = vector.load %arg7[%c0_15, %c0_16] : memref<1x128xf32, #tpu.memory_space<vmem>>, vector<1x128xf32>
    %20 = vector.broadcast %19 : vector<1x128xf32> to vector<128x128xf32>
    %21 = arith.addf %18, %20 : vector<128x128xf32>
    %c0_17 = arith.constant 0 : index
    %c0_18 = arith.constant 0 : index
    %22 = vector.load %arg8[%c0_17, %c0_18] : memref<128x128xf32, #tpu.memory_space<vmem>>, vector<128x128xf32>
    tpu.vector_store %arg8[%c0_17, %c0_18], %21 {strides = array<i32>} : memref<128x128xf32, #tpu.memory_space<vmem>>, vector<128x128xf32>,
    return
  }
  func.func @transform_0(%arg0: i32) -> (i32, i32) {
    %c0_i32 = arith.constant 0 : i32
    %c0_i32_0 = arith.constant 0 : i32
    return %arg0, %c0_i32 : i32, i32
  }
  func.func @transform_1(%arg0: i32) -> (i32, i32) {
    %c0_i32 = arith.constant 0 : i32
    %c0_i32_0 = arith.constant 0 : i32
    %c0_i32_1 = arith.constant 0 : i32
    return %c0_i32, %c0_i32_0 : i32, i32
  }
  func.func @transform_2(%arg0: i32) -> (i32, i32) {
    %c0_i32 = arith.constant 0 : i32
    %c0_i32_0 = arith.constant 0 : i32
    %c0_i32_1 = arith.constant 0 : i32
    return %c0_i32, %c0_i32_0 : i32, i32
  }
  func.func @transform_3(%arg0: i32) -> (i32, i32) {
    %c0_i32 = arith.constant 0 : i32
    %c0_i32_0 = arith.constant 0 : i32
    %c0_i32_1 = arith.constant 0 : i32
    return %c0_i32, %c0_i32_0 : i32, i32
  }
  func.func @transform_4(%arg0: i32) -> (i32, i32) {
    %c0_i32 = arith.constant 0 : i32
    %c0_i32_0 = arith.constant 0 : i32
    %c0_i32_1 = arith.constant 0 : i32
    return %c0_i32, %c0_i32_0 : i32, i32
  }
  func.func @transform_5(%arg0: i32) -> (i32, i32) {
    %c0_i32 = arith.constant 0 : i32
    %c0_i32_0 = arith.constant 0 : i32
    %c0_i32_1 = arith.constant 0 : i32
    return %c0_i32, %c0_i32_0 : i32, i32
  }
  func.func @transform_6(%arg0: i32) -> (i32, i32) {
    %c0_i32 = arith.constant 0 : i32
    %c0_i32_0 = arith.constant 0 : i32
    %c0_i32_1 = arith.constant 0 : i32
    return %c0_i32, %c0_i32_0 : i32, i32
  }
  func.func @transform_7(%arg0: i32) -> (i32, i32) {
    %c0_i32 = arith.constant 0 : i32
    %c0_i32_0 = arith.constant 0 : i32
    return %arg0, %c0_i32 : i32, i32
  }
}

</mosaic_0001>

<llo_original>
// kernel: tpu_custom_call.1
$region0: #{tpu_custom_call.1}
  #allocation0 [shape = 'u32[]', space=smem, size = 0x4, offset = 0x4, fixed_abs, tag = 'smem constant byte address 0x4 - core index']
  #allocation1 [shape = 'u32[144,128]{1,0:T(1,128)}', space=vmem, size = 0x12000, scoped, tag = 'internal scratch']
  %s0 = inlined_call_operand.hbm [shape: bf16[256,256], index: 0, kind: input, shape index: {}]
  %s1 = inlined_call_operand.hbm [shape: bf16[256,384], index: 1, kind: input, shape index: {}]
  %s2 = inlined_call_operand.vmem [shape: f32[1,384], index: 2, kind: input, shape index: {}]
  %s3 = inlined_call_operand.hbm [shape: bf16[384,384], index: 3, kind: input, shape index: {}]
  %s4 = inlined_call_operand.vmem [shape: f32[1,384], index: 4, kind: input, shape index: {}]
  %s5 = inlined_call_operand.hbm [shape: bf16[384,128], index: 5, kind: input, shape index: {}]
  %s6 = inlined_call_operand.vmem [shape: f32[1,128], index: 6, kind: input, shape index: {}]
  %s7 = inlined_call_operand.hbm [shape: f32[256,128], index: 7, kind: output, shape index: {}]
  %s8 = sld [smem:[#allocation0]]
  $region77: #{tpu_custom_call.1} parent=0
    _
  %s10 = ssub.s32 1, %s8
  %s11 = scalar_select 0, %s10, %s8
  $region1: #{tpu_custom_call.1} parent=0
    #allocation2 [shape = 'u8[131072]{0}', space=vmem, size = 0x20000, scoped, tag = 'input window, operand 0']
    #allocation3 [shape = 's32[2]{0}', space=sflag, size = 0x8, scoped, tag = 'scoped memory for tpu_custom_call.1']
    #allocation4 [shape = 's32[2]{0}', space=sflag, size = 0x8, scoped, tag = 'scoped memory for tpu_custom_call.1']
    #allocation5 [shape = 'u8[196608]{0}', space=vmem, size = 0x30000, scoped, tag = 'input window, operand 1, single buffered']
    #allocation6 [shape = 's32[1]{0}', space=sflag, size = 0x4, scoped, tag = 'scoped memory for tpu_custom_call.1']
    #allocation7 [shape = 'u8[294912]{0}', space=vmem, size = 0x48000, scoped, tag = 'input window, operand 3, single buffered']
    #allocation8 [shape = 'u8[98304]{0}', space=vmem, size = 0x18000, scoped, tag = 'input window, operand 5, single buffered']
    #allocation9 [shape = 's32[1]{0}', space=sflag, size = 0x4, scoped, tag = 'scoped memory for tpu_custom_call.1']
    #allocation10 [shape = 'u8[131072]{0}', space=vmem, size = 0x20000, scoped, tag = 'output window, operand 0']
    %12 = vsyncpa [#allocation3], 0
    %s13 = scalar_lea.sflag [#allocation3], 1
    %14 = vsyncpa %s13, 0
    %15 = vsyncpa [#allocation6], 0
    %16 = vsyncpa [#allocation9], 0
    %17 = vsyncpa [#allocation4], 0
    %s18 = scalar_lea.sflag [#allocation4], 1
    %19 = vsyncpa %s18, 0
    loop: start=0, step=1, limit=4
    $region2: #{tpu_custom_call.1} parent=1 // loop_pre_header
      _
    $region3: #{tpu_custom_call.1} parent=1 // loop_header
      %s21 = sphi 0, %s25
      %p22 = scmp.ge.s32.totalorder %s21, 4
      %s31 = sphi 0, %s33
      %s34 = sphi 0, %s31
      %s35 = sphi 0, %s34
      %s51 = sphi 0, %s35
      %s55 = sphi 0, %s55
      %s57 = sphi 0, %s55
      %s58 = sphi 0, %s57
      %s72 = sphi 0, %s58
      %s76 = sphi 0, %s76
      %s78 = sphi 0, %s76
      %s79 = sphi 0, %s78
      %s93 = sphi 0, %s79
      %s97 = sphi 0, %s97
      %s99 = sphi 0, %s97
      %s100 = sphi 0, %s99
      %s114 = sphi 0, %s100
      %s118 = sphi 0, %s118
      %s120 = sphi 0, %s118
      %s121 = sphi 0, %s120
      %s135 = sphi 0, %s121
      %s139 = sphi 0, %s139
      %s141 = sphi 0, %s139
      %s142 = sphi 0, %s141
      %s156 = sphi 0, %s142
      %s160 = sphi 0, %s160
      %s162 = sphi 0, %s160
      %s163 = sphi 0, %s162
      %s177 = sphi 0, %s163
      %s183 = sphi 0, %s185
      %s186 = sphi 0, %s183
      %s187 = sphi 0, %s186
      %s203 = sphi 0, %s187
    $region4: #{tpu_custom_call.1} parent=1 // loop_header_branch
      %24 = sbr.rel (%p22) target = $region8
    $region5: #{tpu_custom_call.1} parent=1 // loop_body
      %s26 = ssub.s32 %s21, 1
      %s27 = ssub.s32 %s21, 2
      %s28 = sadd.s32 %s21, 1
      %s29 = ssub.s32 %s21, %s28
      %p30 = scmp.eq.s32.totalorder %s29, 0
      %s32 = sadd.s32 %s31, 1
      %s33 = scalar_select %p30, %s31, %s32
      %p36 = pneg %p30
      %p37 = scmp.eq.s32.totalorder %s21, 1
      %p38 = por %p36, %p37
      %p39 = scmp.ne.s32.totalorder %s31, %s34
      %p40 = scmp.eq.s32.totalorder %s21, 0
      %p41 = por %p39, %p40
      %p42 = scmp.ne.s32.totalorder %s31, %s34
      %p43 = scmp.eq.s32.totalorder %s26, 1
      %p44 = por %p42, %p43
      %p45 = scmp.ne.s32.totalorder %s34, %s35
      %p46 = scmp.eq.s32.totalorder %s26, 0
      %p47 = por %p45, %p46
      %p48 = scmp.ne.s32.totalorder %s34, %s35
      %p49 = scmp.eq.s32.totalorder %s27, 1
      %p50 = por %p48, %p49
      %p52 = scmp.ne.s32.totalorder %s35, %s51
      %p53 = scmp.eq.s32.totalorder %s27, 0
      %p54 = por %p52, %p53
      %s56 = sadd.s32 %s55, 1
      %p59 = scmp.eq.s32.totalorder %s21, 1
      %p60 = scmp.ne.s32.totalorder %s55, %s57
      %p61 = scmp.eq.s32.totalorder %s21, 0
      %p62 = por %p60, %p61
      %p63 = scmp.ne.s32.totalorder %s55, %s57
      %p64 = scmp.eq.s32.totalorder %s26, 1
      %p65 = por %p63, %p64
      %p66 = scmp.ne.s32.totalorder %s57, %s58
      %p67 = scmp.eq.s32.totalorder %s26, 0
      %p68 = por %p66, %p67
      %p69 = scmp.ne.s32.totalorder %s57, %s58
      %p70 = scmp.eq.s32.totalorder %s27, 1
      %p71 = por %p69, %p70
      %p73 = scmp.ne.s32.totalorder %s58, %s72
      %p74 = scmp.eq.s32.totalorder %s27, 0
      %p75 = por %p73, %p74
      %s77 = sadd.s32 %s76, 1
      %p80 = scmp.eq.s32.totalorder %s21, 1
      %p81 = scmp.ne.s32.totalorder %s76, %s78
      %p82 = scmp.eq.s32.totalorder %s21, 0
      %p83 = por %p81, %p82
      %p84 = scmp.ne.s32.totalorder %s76, %s78
      %p85 = scmp.eq.s32.totalorder %s26, 1
      %p86 = por %p84, %p85
      %p87 = scmp.ne.s32.totalorder %s78, %s79
      %p88 = scmp.eq.s32.totalorder %s26, 0
      %p89 = por %p87, %p88
      %p90 = scmp.ne.s32.totalorder %s78, %s79
      %p91 = scmp.eq.s32.totalorder %s27, 1
      %p92 = por %p90, %p91
      %p94 = scmp.ne.s32.totalorder %s79, %s93
      %p95 = scmp.eq.s32.totalorder %s27, 0
      %p96 = por %p94, %p95
      %s98 = sadd.s32 %s97, 1
      %p101 = scmp.eq.s32.totalorder %s21, 1
      %p102 = scmp.ne.s32.totalorder %s97, %s99
      %p103 = scmp.eq.s32.totalorder %s21, 0
      %p104 = por %p102, %p103
      %p105 = scmp.ne.s32.totalorder %s97, %s99
      %p106 = scmp.eq.s32.totalorder %s26, 1
      %p107 = por %p105, %p106
      %p108 = scmp.ne.s32.totalorder %s99, %s100
      %p109 = scmp.eq.s32.totalorder %s26, 0
      %p110 = por %p108, %p109
      %p111 = scmp.ne.s32.totalorder %s99, %s100
      %p112 = scmp.eq.s32.totalorder %s27, 1
      %p113 = por %p111, %p112
      %p115 = scmp.ne.s32.totalorder %s100, %s114
      %p116 = scmp.eq.s32.totalorder %s27, 0
      %p117 = por %p115, %p116
      %s119 = sadd.s32 %s118, 1
      %p122 = scmp.eq.s32.totalorder %s21, 1
      %p123 = scmp.ne.s32.totalorder %s118, %s120
      %p124 = scmp.eq.s32.totalorder %s21, 0
      %p125 = por %p123, %p124
      %p126 = scmp.ne.s32.totalorder %s118, %s120
      %p127 = scmp.eq.s32.totalorder %s26, 1
      %p128 = por %p126, %p127
      %p129 = scmp.ne.s32.totalorder %s120, %s121
      %p130 = scmp.eq.s32.totalorder %s26, 0
      %p131 = por %p129, %p130
      %p132 = scmp.ne.s32.totalorder %s120, %s121
      %p133 = scmp.eq.s32.totalorder %s27, 1
      %p134 = por %p132, %p133
      %p136 = scmp.ne.s32.totalorder %s121, %s135
      %p137 = scmp.eq.s32.totalorder %s27, 0
      %p138 = por %p136, %p137
      %s140 = sadd.s32 %s139, 1
      %p143 = scmp.eq.s32.totalorder %s21, 1
      %p144 = scmp.ne.s32.totalorder %s139, %s141
      %p145 = scmp.eq.s32.totalorder %s21, 0
      %p146 = por %p144, %p145
      %p147 = scmp.ne.s32.totalorder %s139, %s141
      %p148 = scmp.eq.s32.totalorder %s26, 1
      %p149 = por %p147, %p148
      %p150 = scmp.ne.s32.totalorder %s141, %s142
      %p151 = scmp.eq.s32.totalorder %s26, 0
      %p152 = por %p150, %p151
      %p153 = scmp.ne.s32.totalorder %s141, %s142
      %p154 = scmp.eq.s32.totalorder %s27, 1
      %p155 = por %p153, %p154
      %p157 = scmp.ne.s32.totalorder %s142, %s156
      %p158 = scmp.eq.s32.totalorder %s27, 0
      %p159 = por %p157, %p158
      %s161 = sadd.s32 %s160, 1
      %p164 = scmp.eq.s32.totalorder %s21, 1
      %p165 = scmp.ne.s32.totalorder %s160, %s162
      %p166 = scmp.eq.s32.totalorder %s21, 0
      %p167 = por %p165, %p166
      %p168 = scmp.ne.s32.totalorder %s160, %s162
      %p169 = scmp.eq.s32.totalorder %s26, 1
      %p170 = por %p168, %p169
      %p171 = scmp.ne.s32.totalorder %s162, %s163
      %p172 = scmp.eq.s32.totalorder %s26, 0
      %p173 = por %p171, %p172
      %p174 = scmp.ne.s32.totalorder %s162, %s163
      %p175 = scmp.eq.s32.totalorder %s27, 1
      %p176 = por %p174, %p175
      %p178 = scmp.ne.s32.totalorder %s163, %s177
      %p179 = scmp.eq.s32.totalorder %s27, 0
      %p180 = por %p178, %p179
      %s181 = ssub.s32 %s21, %s28
      %p182 = scmp.eq.s32.totalorder %s181, 0
      %s184 = sadd.s32 %s183, 1
      %s185 = scalar_select %p182, %s183, %s184
      %p188 = pneg %p182
      %p189 = scmp.eq.s32.totalorder %s21, 1
      %p190 = por %p188, %p189
      %p191 = scmp.ne.s32.totalorder %s183, %s186
      %p192 = scmp.eq.s32.totalorder %s21, 0
      %p193 = por %p191, %p192
      %p194 = scmp.ne.s32.totalorder %s183, %s186
      %p195 = scmp.eq.s32.totalorder %s26, 1
      %p196 = por %p194, %p195
      %p197 = scmp.ne.s32.totalorder %s186, %s187
      %p198 = scmp.eq.s32.totalorder %s26, 0
      %p199 = por %p197, %p198
      %p200 = scmp.ne.s32.totalorder %s186, %s187
      %p201 = scmp.eq.s32.totalorder %s27, 1
      %p202 = por %p200, %p201
      %p204 = scmp.ne.s32.totalorder %s187, %s203
      %p205 = scmp.eq.s32.totalorder %s27, 0
      %p206 = por %p204, %p205
      %p207 = scmp.le.s32.totalorder 1, %s21
      %p208 = scmp.lt.s32.totalorder %s21, 3
      %p209 = pnand %p207, %p208
      %p210 = pneg %p209
      // Predicated region
      $region9: #{tpu_custom_call.1} parent=5 // pred_check
        _
      $region10: #{tpu_custom_call.1} parent=5 // pred_check_branch
        %212 = sbr.rel (%p209) target = $region12
      $region11: #{tpu_custom_call.1} parent=5 // pred_region
        %s213 = ssub.s32 %s21, 1
        // Predicated region
        $region13: #{tpu_custom_call.1} parent=11 // pred_check
          %p214 = pneg %p68
        $region14: #{tpu_custom_call.1} parent=11 // pred_check_branch
          %216 = sbr.rel (%p214) target = $region16
        $region15: #{tpu_custom_call.1} parent=11 // pred_region
          %s218 = ssub.s32 6144, 6144
          %219 = vsyncadd [#allocation6], %s218
          %s220 = sshll.u32 [#allocation5], 4
          %s221 = int_to_ptr.vmem [resolvable:$true] %s220
          %226 = dma.hbm_to_vmem [thread:$0]  %s1, 6144, %s221, [#allocation6], 192, 192, 12
        $region16: #{tpu_custom_call.1} parent=11 // pred_fallthru
          _
        // Predicated region
        $region17: #{tpu_custom_call.1} parent=11 // pred_check
          %p227 = pneg %p89
        $region18: #{tpu_custom_call.1} parent=11 // pred_check_branch
          %229 = sbr.rel (%p227) target = $region20
        $region19: #{tpu_custom_call.1} parent=11 // pred_region
          _
        $region20: #{tpu_custom_call.1} parent=11 // pred_fallthru
          _
        // Predicated region
        $region21: #{tpu_custom_call.1} parent=11 // pred_check
          %p230 = pneg %p110
        $region22: #{tpu_custom_call.1} parent=11 // pred_check_branch
          %232 = sbr.rel (%p230) target = $region24
        $region23: #{tpu_custom_call.1} parent=11 // pred_region
          %s234 = ssub.s32 9216, 9216
          %235 = vsyncadd [#allocation6], %s234
          %s236 = sshll.u32 [#allocation7], 4
          %s237 = int_to_ptr.vmem [resolvable:$true] %s236
          %242 = dma.hbm_to_vmem [thread:$0]  %s3, 9216, %s237, [#allocation6], 192, 192, 12
        $region24: #{tpu_custom_call.1} parent=11 // pred_fallthru
          _
        // Predicated region
        $region25: #{tpu_custom_call.1} parent=11 // pred_check
          %p243 = pneg %p131
        $region26: #{tpu_custom_call.1} parent=11 // pred_check_branch
          %245 = sbr.rel (%p243) target = $region28
        $region27: #{tpu_custom_call.1} parent=11 // pred_region
          _
        $region28: #{tpu_custom_call.1} parent=11 // pred_fallthru
          _
        // Predicated region
        $region29: #{tpu_custom_call.1} parent=11 // pred_check
          %p246 = pneg %p152
        $region30: #{tpu_custom_call.1} parent=11 // pred_check_branch
          %248 = sbr.rel (%p246) target = $region32
        $region31: #{tpu_custom_call.1} parent=11 // pred_region
          %s250 = ssub.s32 3072, 3072
          %251 = vsyncadd [#allocation9], %s250
          %s252 = sshll.u32 [#allocation8], 4
          %s253 = int_to_ptr.vmem [resolvable:$true] %s252
          %258 = dma.hbm_to_vmem [thread:$0]  %s5, 3072, %s253, [#allocation9], 64, 64, 4
        $region32: #{tpu_custom_call.1} parent=11 // pred_fallthru
          _
        // Predicated region
        $region33: #{tpu_custom_call.1} parent=11 // pred_check
          %p259 = pneg %p173
        $region34: #{tpu_custom_call.1} parent=11 // pred_check_branch
          %261 = sbr.rel (%p259) target = $region36
        $region35: #{tpu_custom_call.1} parent=11 // pred_region
          _
        $region36: #{tpu_custom_call.1} parent=11 // pred_fallthru
          _
      $region12: #{tpu_custom_call.1} parent=5 // pred_fallthru
        _
      %p262 = scmp.lt.s32.totalorder %s21, 2
      // Predicated region
      $region37: #{tpu_custom_call.1} parent=5 // pred_check
        %p263 = pneg %p262
      $region38: #{tpu_custom_call.1} parent=5 // pred_check_branch
        %265 = sbr.rel (%p263) target = $region40
      $region39: #{tpu_custom_call.1} parent=5 // pred_region
        // Predicated region
        $region41: #{tpu_custom_call.1} parent=39 // pred_check
          %p266 = pneg %p41
        $region42: #{tpu_custom_call.1} parent=39 // pred_check_branch
          %268 = sbr.rel (%p266) target = $region44
        $region43: #{tpu_custom_call.1} parent=39 // pred_region
          %s269 = sand.u32 %s31, 1
          %s270 = scalar_lea.sflag [#allocation3], %s269
          %s271 = sand.u32 %s31, 1
          %s272 = smul.addr %s271, 128
          %s273 = scalar_lea.vmem [#allocation2], %s272
          %s274 = smul.u32 16, %s21
          %s276 = ssub.s32 2048, 2048
          %277 = vsyncadd %s270, %s276
          %s278 = smul.addr %s274, 2
          %s279 = smul.addr %s278, 64
          %s280 = scalar_lea.hbm %s0, %s279
          %s281 = sshll.u32 %s273, 4
          %s282 = int_to_ptr.vmem [resolvable:$true] %s281
          %287 = dma.hbm_to_vmem [thread:$0]  %s280, 2048, %s282, %s270, 128, 128, 8
        $region44: #{tpu_custom_call.1} parent=39 // pred_fallthru
          _
      $region40: #{tpu_custom_call.1} parent=5 // pred_fallthru
        _
      %p288 = scmp.le.s32.totalorder 1, %s21
      %p289 = scmp.lt.s32.totalorder %s21, 3
      %p290 = pnand %p288, %p289
      %p291 = pneg %p290
      // Predicated region
      $region45: #{tpu_custom_call.1} parent=5 // pred_check
        _
      $region46: #{tpu_custom_call.1} parent=5 // pred_check_branch
        %293 = sbr.rel (%p290) target = $region48
      $region47: #{tpu_custom_call.1} parent=5 // pred_region
        %s294 = ssub.s32 %s21, 1
        %s295 = sand.u32 %s34, 1
        %s296 = scalar_lea.sflag [#allocation3], %s295
        %s297 = sand.u32 %s34, 1
        %s298 = smul.addr %s297, 128
        %s299 = scalar_lea.vmem [#allocation2], %s298
        // Predicated region
        $region49: #{tpu_custom_call.1} parent=47 // pred_check
          %p300 = pneg %p47
        $region50: #{tpu_custom_call.1} parent=47 // pred_check_branch
          %302 = sbr.rel (%p300) target = $region52
        $region51: #{tpu_custom_call.1} parent=47 // pred_region
          %303 = dma.done %s296, 2048
        $region52: #{tpu_custom_call.1} parent=47 // pred_fallthru
          _
        // Predicated region
        $region53: #{tpu_custom_call.1} parent=47 // pred_check
          %p304 = pneg %p68
        $region54: #{tpu_custom_call.1} parent=47 // pred_check_branch
          %306 = sbr.rel (%p304) target = $region56
        $region55: #{tpu_custom_call.1} parent=47 // pred_region
          %307 = dma.done [#allocation6], 6144
        $region56: #{tpu_custom_call.1} parent=47 // pred_fallthru
          _
        // Predicated region
        $region57: #{tpu_custom_call.1} parent=47 // pred_check
          %p308 = pneg %p110
        $region58: #{tpu_custom_call.1} parent=47 // pred_check_branch
          %310 = sbr.rel (%p308) target = $region60
        $region59: #{tpu_custom_call.1} parent=47 // pred_region
          %311 = dma.done [#allocation6], 9216
        $region60: #{tpu_custom_call.1} parent=47 // pred_fallthru
          _
        // Predicated region
        $region61: #{tpu_custom_call.1} parent=47 // pred_check
          %p312 = pneg %p152
        $region62: #{tpu_custom_call.1} parent=47 // pred_check_branch
          %314 = sbr.rel (%p312) target = $region64
        $region63: #{tpu_custom_call.1} parent=47 // pred_region
          %315 = dma.done [#allocation9], 3072
        $region64: #{tpu_custom_call.1} parent=47 // pred_fallthru
          _
        %s316 = sand.u32 %s34, 1
        %s317 = scalar_lea.sflag [#allocation3], %s316
        %s318 = sand.u32 %s34, 1
        %s319 = smul.addr %s318, 128
        %s320 = scalar_lea.vmem [#allocation2], %s319
        %p321 = pneg %p47
        %p322 = pneg %p44
        %p323 = pneg %p68
        %p324 = pneg %p65
        %p325 = pneg %p89
        %p326 = pneg %p86
        %p327 = pneg %p110
        %p328 = pneg %p107
        %p329 = pneg %p131
        %p330 = pneg %p128
        %p331 = pneg %p152
        %p332 = pneg %p149
        %p333 = pneg %p173
        %p334 = pneg %p170
        %p335 = pneg %p199
        %p336 = pneg %p196
        %s337 = sand.u32 %s186, 1
        %s338 = scalar_lea.sflag [#allocation4], %s337
        %s339 = sand.u32 %s186, 1
        %s340 = smul.addr %s339, 128
        %s341 = scalar_lea.vmem [#allocation10], %s340
        %s342 = smul.u32 16, %s26
        %s343 = smul.u32 16, %s26
        %v345 = vld [vmem:[%s299] sm:$0xff]
        %v346 = vld [vmem:[%s299 + $0x8] sm:$0xff]
        %v347 = vld [vmem:[%s299 + $0x10] sm:$0xff]
        %v348 = vld [vmem:[%s299 + $0x18] sm:$0xff]
        %v349 = vld [vmem:[%s299 + $0x20] sm:$0xff]
        %v350 = vld [vmem:[%s299 + $0x28] sm:$0xff]
        %v351 = vld [vmem:[%s299 + $0x30] sm:$0xff]
        %v352 = vld [vmem:[%s299 + $0x38] sm:$0xff]
        %v353 = vld [vmem:[%s299 + $0x40] sm:$0xff]
        %v354 = vld [vmem:[%s299 + $0x48] sm:$0xff]
        %v355 = vld [vmem:[%s299 + $0x50] sm:$0xff]
        %v356 = vld [vmem:[%s299 + $0x58] sm:$0xff]
        %v357 = vld [vmem:[%s299 + $0x60] sm:$0xff]
        %v358 = vld [vmem:[%s299 + $0x68] sm:$0xff]
        %v359 = vld [vmem:[%s299 + $0x70] sm:$0xff]
        %v360 = vld [vmem:[%s299 + $0x78] sm:$0xff]
        %v361 = vld [vmem:[#allocation5] sm:$0xff]
        %v362 = vld [vmem:[#allocation5 + $0x8] sm:$0xf]
        %v363 = vld [vmem:[#allocation5 + $0xc] sm:$0xff]
        %v364 = vld [vmem:[#allocation5 + $0x14] sm:$0xf]
        %v365 = vld [vmem:[#allocation5 + $0x18] sm:$0xff]
        %v366 = vld [vmem:[#allocation5 + $0x20] sm:$0xf]
        %v367 = vld [vmem:[#allocation5 + $0x24] sm:$0xff]
        %v368 = vld [vmem:[#allocation5 + $0x2c] sm:$0xf]
        %v369 = vld [vmem:[#allocation5 + $0x30] sm:$0xff]
        %v370 = vld [vmem:[#allocation5 + $0x38] sm:$0xf]
        %v371 = vld [vmem:[#allocation5 + $0x3c] sm:$0xff]
        %v372 = vld [vmem:[#allocation5 + $0x44] sm:$0xf]
        %v373 = vld [vmem:[#allocation5 + $0x48] sm:$0xff]
        %v374 = vld [vmem:[#allocation5 + $0x50] sm:$0xf]
        %v375 = vld [vmem:[#allocation5 + $0x54] sm:$0xff]
        %v376 = vld [vmem:[#allocation5 + $0x5c] sm:$0xf]
        %v377 = vld [vmem:[#allocation5 + $0x60] sm:$0xff]
        %v378 = vld [vmem:[#allocation5 + $0x68] sm:$0xf]
        %v379 = vld [vmem:[#allocation5 + $0x6c] sm:$0xff]
        %v380 = vld [vmem:[#allocation5 + $0x74] sm:$0xf]
        %v381 = vld [vmem:[#allocation5 + $0x78] sm:$0xff]
        %v382 = vld [vmem:[#allocation5 + $0x80] sm:$0xf]
        %v383 = vld [vmem:[#allocation5 + $0x84] sm:$0xff]
        %v384 = vld [vmem:[#allocation5 + $0x8c] sm:$0xf]
        %v385 = vld [vmem:[#allocation5 + $0x90] sm:$0xff]
        %v386 = vld [vmem:[#allocation5 + $0x98] sm:$0xf]
        %v387 = vld [vmem:[#allocation5 + $0x9c] sm:$0xff]
        %v388 = vld [vmem:[#allocation5 + $0xa4] sm:$0xf]
        %v389 = vld [vmem:[#allocation5 + $0xa8] sm:$0xff]
        %v390 = vld [vmem:[#allocation5 + $0xb0] sm:$0xf]
        %v391 = vld [vmem:[#allocation5 + $0xb4] sm:$0xff]
        %v392 = vld [vmem:[#allocation5 + $0xbc] sm:$0xf]
        %v393 = vld [vmem:[#allocation5 + $0xc0] sm:$0xff]
        %v394 = vld [vmem:[#allocation5 + $0xc8] sm:$0xf]
        %v395 = vld [vmem:[#allocation5 + $0xcc] sm:$0xff]
        %v396 = vld [vmem:[#allocation5 + $0xd4] sm:$0xf]
        %v397 = vld [vmem:[#allocation5 + $0xd8] sm:$0xff]
        %v398 = vld [vmem:[#allocation5 + $0xe0] sm:$0xf]
        %v399 = vld [vmem:[#allocation5 + $0xe4] sm:$0xff]
        %v400 = vld [vmem:[#allocation5 + $0xec] sm:$0xf]
        %v401 = vld [vmem:[#allocation5 + $0xf0] sm:$0xff]
        %v402 = vld [vmem:[#allocation5 + $0xf8] sm:$0xf]
        %v403 = vld [vmem:[#allocation5 + $0xfc] sm:$0xff]
        %v404 = vld [vmem:[#allocation5 + $0x104] sm:$0xf]
        %v405 = vld [vmem:[#allocation5 + $0x108] sm:$0xff]
        %v406 = vld [vmem:[#allocation5 + $0x110] sm:$0xf]
        %v407 = vld [vmem:[#allocation5 + $0x114] sm:$0xff]
        %v408 = vld [vmem:[#allocation5 + $0x11c] sm:$0xf]
        %v409 = vld [vmem:[#allocation5 + $0x120] sm:$0xff]
        %v410 = vld [vmem:[#allocation5 + $0x128] sm:$0xf]
        %v411 = vld [vmem:[#allocation5 + $0x12c] sm:$0xff]
        %v412 = vld [vmem:[#allocation5 + $0x134] sm:$0xf]
        %v413 = vld [vmem:[#allocation5 + $0x138] sm:$0xff]
        %v414 = vld [vmem:[#allocation5 + $0x140] sm:$0xf]
        %v415 = vld [vmem:[#allocation5 + $0x144] sm:$0xff]
        %v416 = vld [vmem:[#allocation5 + $0x14c] sm:$0xf]
        %v417 = vld [vmem:[#allocation5 + $0x150] sm:$0xff]
        %v418 = vld [vmem:[#allocation5 + $0x158] sm:$0xf]
        %v419 = vld [vmem:[#allocation5 + $0x15c] sm:$0xff]
        %v420 = vld [vmem:[#allocation5 + $0x164] sm:$0xf]
        %v421 = vld [vmem:[#allocation5 + $0x168] sm:$0xff]
        %v422 = vld [vmem:[#allocation5 + $0x170] sm:$0xf]
        %v423 = vld [vmem:[#allocation5 + $0x174] sm:$0xff]
        %v424 = vld [vmem:[#allocation5 + $0x17c] sm:$0xf]
        %v425 = vld [vmem:[%s2] sm:$0x7]
        %v427 = vlaneseq
        %v428 = vshrl.u32 %v427, 7
        %v429 = vsub.s32 0, %v428
        %v430 = vrot.slane %v425, %v429
        %v431 = vlaneseq
        %v432 = vshrl.u32 %v431, 7
        %v433 = vsub.s32 1, %v432
        %v434 = vrot.slane %v425, %v433
        %v435 = vlaneseq
        %v436 = vshrl.u32 %v435, 7
        %v437 = vsub.s32 2, %v436
        %v438 = vrot.slane %v425, %v437
        %v458 = vunpack.c.l.b16 %v345
        %v459 = vunpack.c.h.b16 %v345
        %v460 = vunpack.c.l.b16 %v346
        %v461 = vunpack.c.h.b16 %v346
        %v462 = vunpack.c.l.b16 %v347
        %v463 = vunpack.c.h.b16 %v347
        %v464 = vunpack.c.l.b16 %v348
        %v465 = vunpack.c.h.b16 %v348
        %v466 = vunpack.c.l.b16 %v349
        %v467 = vunpack.c.h.b16 %v349
        %v468 = vunpack.c.l.b16 %v350
        %v469 = vunpack.c.h.b16 %v350
        %v470 = vunpack.c.l.b16 %v351
        %v471 = vunpack.c.h.b16 %v351
        %v472 = vunpack.c.l.b16 %v352
        %v473 = vunpack.c.h.b16 %v352
        %v474 = vunpack.c.l.b16 %v353
        %v475 = vunpack.c.h.b16 %v353
        %v476 = vunpack.c.l.b16 %v354
        %v477 = vunpack.c.h.b16 %v354
        %v478 = vunpack.c.l.b16 %v355
        %v479 = vunpack.c.h.b16 %v355
        %v480 = vunpack.c.l.b16 %v356
        %v481 = vunpack.c.h.b16 %v356
        %v482 = vunpack.c.l.b16 %v357
        %v483 = vunpack.c.h.b16 %v357
        %v484 = vunpack.c.l.b16 %v358
        %v485 = vunpack.c.h.b16 %v358
        %v486 = vunpack.c.l.b16 %v359
        %v487 = vunpack.c.h.b16 %v359
        %v488 = vunpack.c.l.b16 %v360
        %v489 = vunpack.c.h.b16 %v360
        %v490 = vpack.c.b16 %v460, %v458
        %v491 = vpack.c.b16 %v461, %v459
        %v492 = vpack.c.b16 %v464, %v462
        %v493 = vpack.c.b16 %v465, %v463
        %v494 = vpack.c.b16 %v468, %v466
        %v495 = vpack.c.b16 %v469, %v467
        %v496 = vpack.c.b16 %v472, %v470
        %v497 = vpack.c.b16 %v473, %v471
        %v498 = vpack.c.b16 %v476, %v474
        %v499 = vpack.c.b16 %v477, %v475
        %v500 = vpack.c.b16 %v480, %v478
        %v501 = vpack.c.b16 %v481, %v479
        %v502 = vpack.c.b16 %v484, %v482
        %v503 = vpack.c.b16 %v485, %v483
        %v504 = vpack.c.b16 %v488, %v486
        %v505 = vpack.c.b16 %v489, %v487
        %v586 = vunpack.c.l.b16 %v361
        %v587 = vunpack.c.h.b16 %v361
        %v588 = vunpack.c.l.b16 %v362
        %v589 = vunpack.c.l.b16 %v363
        %v590 = vunpack.c.h.b16 %v363
        %v591 = vunpack.c.l.b16 %v364
        %v592 = vunpack.c.l.b16 %v365
        %v593 = vunpack.c.h.b16 %v365
        %v594 = vunpack.c.l.b16 %v366
        %v595 = vunpack.c.l.b16 %v367
        %v596 = vunpack.c.h.b16 %v367
        %v597 = vunpack.c.l.b16 %v368
        %v598 = vunpack.c.l.b16 %v369
        %v599 = vunpack.c.h.b16 %v369
        %v600 = vunpack.c.l.b16 %v370
        %v601 = vunpack.c.l.b16 %v371
        %v602 = vunpack.c.h.b16 %v371
        %v603 = vunpack.c.l.b16 %v372
        %v604 = vunpack.c.l.b16 %v373
        %v605 = vunpack.c.h.b16 %v373
        %v606 = vunpack.c.l.b16 %v374
        %v607 = vunpack.c.l.b16 %v375
        %v608 = vunpack.c.h.b16 %v375
        %v609 = vunpack.c.l.b16 %v376
        %v610 = vunpack.c.l.b16 %v377
        %v611 = vunpack.c.h.b16 %v377
        %v612 = vunpack.c.l.b16 %v378
        %v613 = vunpack.c.l.b16 %v379
        %v614 = vunpack.c.h.b16 %v379
        %v615 = vunpack.c.l.b16 %v380
        %v616 = vunpack.c.l.b16 %v381
        %v617 = vunpack.c.h.b16 %v381
        %v618 = vunpack.c.l.b16 %v382
        %v619 = vunpack.c.l.b16 %v383
        %v620 = vunpack.c.h.b16 %v383
        %v621 = vunpack.c.l.b16 %v384
        %v622 = vunpack.c.l.b16 %v385
        %v623 = vunpack.c.h.b16 %v385
        %v624 = vunpack.c.l.b16 %v386
        %v625 = vunpack.c.l.b16 %v387
        %v626 = vunpack.c.h.b16 %v387
        %v627 = vunpack.c.l.b16 %v388
        %v628 = vunpack.c.l.b16 %v389
        %v629 = vunpack.c.h.b16 %v389
        %v630 = vunpack.c.l.b16 %v390
        %v631 = vunpack.c.l.b16 %v391
        %v632 = vunpack.c.h.b16 %v391
        %v633 = vunpack.c.l.b16 %v392
        %v634 = vunpack.c.l.b16 %v393
        %v635 = vunpack.c.h.b16 %v393
        %v636 = vunpack.c.l.b16 %v394
        %v637 = vunpack.c.l.b16 %v395
        %v638 = vunpack.c.h.b16 %v395
        %v639 = vunpack.c.l.b16 %v396
        %v640 = vunpack.c.l.b16 %v397
        %v641 = vunpack.c.h.b16 %v397
        %v642 = vunpack.c.l.b16 %v398
        %v643 = vunpack.c.l.b16 %v399
        %v644 = vunpack.c.h.b16 %v399
        %v645 = vunpack.c.l.b16 %v400
        %v646 = vunpack.c.l.b16 %v401
        %v647 = vunpack.c.h.b16 %v401
        %v648 = vunpack.c.l.b16 %v402
        %v649 = vunpack.c.l.b16 %v403
        %v650 = vunpack.c.h.b16 %v403
        %v651 = vunpack.c.l.b16 %v404
        %v652 = vunpack.c.l.b16 %v405
        %v653 = vunpack.c.h.b16 %v405
        %v654 = vunpack.c.l.b16 %v406
        %v655 = vunpack.c.l.b16 %v407
        %v656 = vunpack.c.h.b16 %v407
        %v657 = vunpack.c.l.b16 %v408
        %v658 = vunpack.c.l.b16 %v409
        %v659 = vunpack.c.h.b16 %v409
        %v660 = vunpack.c.l.b16 %v410
        %v661 = vunpack.c.l.b16 %v411
        %v662 = vunpack.c.h.b16 %v411
        %v663 = vunpack.c.l.b16 %v412
        %v664 = vunpack.c.l.b16 %v413
        %v665 = vunpack.c.h.b16 %v413
        %v666 = vunpack.c.l.b16 %v414
        %v667 = vunpack.c.l.b16 %v415
        %v668 = vunpack.c.h.b16 %v415
        %v669 = vunpack.c.l.b16 %v416
        %v670 = vunpack.c.l.b16 %v417
        %v671 = vunpack.c.h.b16 %v417
        %v672 = vunpack.c.l.b16 %v418
        %v673 = vunpack.c.l.b16 %v419
        %v674 = vunpack.c.h.b16 %v419
        %v675 = vunpack.c.l.b16 %v420
        %v676 = vunpack.c.l.b16 %v421
        %v677 = vunpack.c.h.b16 %v421
        %v678 = vunpack.c.l.b16 %v422
        %v679 = vunpack.c.l.b16 %v423
        %v680 = vunpack.c.h.b16 %v423
        %v681 = vunpack.c.l.b16 %v424
        %v682 = vpack.c.b16 %v589, %v586
        %v683 = vpack.c.b16 %v590, %v587
        %v684 = vpack.c.b16 %v591, %v588
        %v685 = vpack.c.b16 %v595, %v592
        %v686 = vpack.c.b16 %v596, %v593
        %v687 = vpack.c.b16 %v597, %v594
        %v688 = vpack.c.b16 %v601, %v598
        %v689 = vpack.c.b16 %v602, %v599
        %v690 = vpack.c.b16 %v603, %v600
        %v691 = vpack.c.b16 %v607, %v604
        %v692 = vpack.c.b16 %v608, %v605
        %v693 = vpack.c.b16 %v609, %v606
        %v694 = vpack.c.b16 %v613, %v610
        %v695 = vpack.c.b16 %v614, %v611
        %v696 = vpack.c.b16 %v615, %v612
        %v697 = vpack.c.b16 %v619, %v616
        %v698 = vpack.c.b16 %v620, %v617
        %v699 = vpack.c.b16 %v621, %v618
        %v700 = vpack.c.b16 %v625, %v622
        %v701 = vpack.c.b16 %v626, %v623
        %v702 = vpack.c.b16 %v627, %v624
        %v703 = vpack.c.b16 %v631, %v628
        %v704 = vpack.c.b16 %v632, %v629
        %v705 = vpack.c.b16 %v633, %v630
        %v706 = vpack.c.b16 %v637, %v634
        %v707 = vpack.c.b16 %v638, %v635
        %v708 = vpack.c.b16 %v639, %v636
        %v709 = vpack.c.b16 %v643, %v640
        %v710 = vpack.c.b16 %v644, %v641
        %v711 = vpack.c.b16 %v645, %v642
        %v712 = vpack.c.b16 %v649, %v646
        %v713 = vpack.c.b16 %v650, %v647
        %v714 = vpack.c.b16 %v651, %v648
        %v715 = vpack.c.b16 %v655, %v652
        %v716 = vpack.c.b16 %v656, %v653
        %v717 = vpack.c.b16 %v657, %v654
        %v718 = vpack.c.b16 %v661, %v658
        %v719 = vpack.c.b16 %v662, %v659
        %v720 = vpack.c.b16 %v663, %v660
        %v721 = vpack.c.b16 %v667, %v664
        %v722 = vpack.c.b16 %v668, %v665
        %v723 = vpack.c.b16 %v669, %v666
        %v724 = vpack.c.b16 %v673, %v670
        %v725 = vpack.c.b16 %v674, %v671
        %v726 = vpack.c.b16 %v675, %v672
        %v727 = vpack.c.b16 %v679, %v676
        %v728 = vpack.c.b16 %v680, %v677
        %v729 = vpack.c.b16 %v681, %v678
        %778 = vmatprep.subr.bf16.mxu0 %v704
        %779 = vmatpush1.bf16.msra.mxu0 %v703
        %780 = vmatprep.subr.bf16.mxu0 %v701
        %781 = vmatpush1.bf16.msra.mxu0 %v700
        %782 = vmatprep.subr.bf16.mxu0 %v698
        %783 = vmatpush1.bf16.msra.mxu0 %v697
        %784 = vmatprep.subr.bf16.mxu0 %v695
        %785 = vmatpush1.bf16.msra.mxu0 %v694
        %786 = vmatprep.subr.bf16.mxu0 %v692
        %787 = vmatpush1.bf16.msra.mxu0 %v691
        %788 = vmatprep.subr.bf16.mxu0 %v689
        %789 = vmatpush1.bf16.msra.mxu0 %v688
        %790 = vmatprep.subr.bf16.mxu0 %v686
        %791 = vmatpush1.bf16.msra.mxu0 %v685
        %792 = vmatprep.subr.bf16.mxu0 %v683
        %793 = vmatpush1.bf16.msra.mxu0 %v682
        %794 = vmatprep.subr.bf16.mxu0 %v728
        %795 = vmatpush2.bf16.msra.mxu0 %v727
        %796 = vmatprep.subr.bf16.mxu0 %v725
        %797 = vmatpush2.bf16.msra.mxu0 %v724
        %798 = vmatprep.subr.bf16.mxu0 %v722
        %799 = vmatpush2.bf16.msra.mxu0 %v721
        %800 = vmatprep.subr.bf16.mxu0 %v719
        %801 = vmatpush2.bf16.msra.mxu0 %v718
        %802 = vmatprep.subr.bf16.mxu0 %v716
        %803 = vmatpush2.bf16.msra.mxu0 %v715
        %804 = vmatprep.subr.bf16.mxu0 %v713
        %805 = vmatpush2.bf16.msra.mxu0 %v712
        %806 = vmatprep.subr.bf16.mxu0 %v710
        %807 = vmatpush2.bf16.msra.mxu0 %v709
        %808 = vmatprep.subr.bf16.mxu0 %v707
        %809 = vmatpush2.bf16.msra.mxu0 %v706
        %810 = vmatprep.mubr.bf16.mxu0 %v491
        %811 = vmatmul.mubr.bf16.gmra.mxu0 %v490
        %v812 = vpop.f32.mrf.mxu0
        %v813 = vadd.f32 %v430, %v812
        %v814 = vpop.f32.mrf.mxu0
        %v815 = vadd.f32 %v434, %v814
        %v816 = vpop.f32.mrf.mxu0
        %v817 = vadd.f32 %v430, %v816
        %v818 = vpop.f32.mrf.mxu0
        %v819 = vadd.f32 %v434, %v818
        %820 = vmatprep.mubr.bf16.mxu0 %v493
        %821 = vmatmul.mubr.bf16.gmra.mxu0 %v492
        %v822 = vpop.f32.mrf.mxu0
        %v823 = vadd.f32 %v430, %v822
        %v824 = vpop.f32.mrf.mxu0
        %v825 = vadd.f32 %v434, %v824
        %v826 = vpop.f32.mrf.mxu0
        %v827 = vadd.f32 %v430, %v826
        %v828 = vpop.f32.mrf.mxu0
        %v829 = vadd.f32 %v434, %v828
        %830 = vmatprep.mubr.bf16.mxu0 %v495
        %831 = vmatmul.mubr.bf16.gmra.mxu0 %v494
        %v832 = vpop.f32.mrf.mxu0
        %v833 = vadd.f32 %v430, %v832
        %v834 = vpop.f32.mrf.mxu0
        %v835 = vadd.f32 %v434, %v834
        %v836 = vpop.f32.mrf.mxu0
        %v837 = vadd.f32 %v430, %v836
        %v838 = vpop.f32.mrf.mxu0
        %v839 = vadd.f32 %v434, %v838
        %840 = vmatprep.mubr.bf16.mxu0 %v497
        %841 = vmatmul.mubr.bf16.gmra.mxu0 %v496
        %v842 = vpop.f32.mrf.mxu0
        %v843 = vadd.f32 %v430, %v842
        %v844 = vpop.f32.mrf.mxu0
        %v845 = vadd.f32 %v434, %v844
        %v846 = vpop.f32.mrf.mxu0
        %v847 = vadd.f32 %v430, %v846
        %v848 = vpop.f32.mrf.mxu0
        %v849 = vadd.f32 %v434, %v848
        %850 = vmatprep.mubr.bf16.mxu0 %v499
        %851 = vmatmul.mubr.bf16.gmra.mxu0 %v498
        %v852 = vpop.f32.mrf.mxu0
        %v853 = vadd.f32 %v430, %v852
        %v854 = vpop.f32.mrf.mxu0
        %v855 = vadd.f32 %v434, %v854
        %v856 = vpop.f32.mrf.mxu0
        %v857 = vadd.f32 %v430, %v856
        %v858 = vpop.f32.mrf.mxu0
        %v859 = vadd.f32 %v434, %v858
        %860 = vmatprep.mubr.bf16.mxu0 %v501
        %861 = vmatmul.mubr.bf16.gmra.mxu0 %v500
        %v862 = vpop.f32.mrf.mxu0
        %v863 = vadd.f32 %v430, %v862
        %v864 = vpop.f32.mrf.mxu0
        %v865 = vadd.f32 %v434, %v864
        %v866 = vpop.f32.mrf.mxu0
        %v867 = vadd.f32 %v430, %v866
        %v868 = vpop.f32.mrf.mxu0
        %v869 = vadd.f32 %v434, %v868
        %870 = vmatprep.mubr.bf16.mxu0 %v503
        %871 = vmatmul.mubr.bf16.gmra.mxu0 %v502
        %v872 = vpop.f32.mrf.mxu0
        %v873 = vadd.f32 %v430, %v872
        %v874 = vpop.f32.mrf.mxu0
        %v875 = vadd.f32 %v434, %v874
        %v876 = vpop.f32.mrf.mxu0
        %v877 = vadd.f32 %v430, %v876
        %v878 = vpop.f32.mrf.mxu0
        %v879 = vadd.f32 %v434, %v878
        %880 = vmatprep.mubr.bf16.mxu0 %v505
        %881 = vmatmul.mubr.bf16.gmra.mxu0 %v504
        %v882 = vpop.f32.mrf.mxu0
        %v883 = vadd.f32 %v430, %v882
        %v884 = vpop.f32.mrf.mxu0
        %v885 = vadd.f32 %v434, %v884
        %v886 = vpop.f32.mrf.mxu0
        %v887 = vadd.f32 %v430, %v886
        %v888 = vpop.f32.mrf.mxu0
        %v889 = vadd.f32 %v434, %v888
        %890 = vdwg.mxu0
        %891 = vmatprep.subr.bf16.mxu0 0
        %892 = vmatpush1.bf16.msra.mxu0 %v705
        %893 = vmatprep.subr.bf16.mxu0 0
        %894 = vmatpush1.bf16.msra.mxu0 %v702
        %895 = vmatprep.subr.bf16.mxu0 0
        %896 = vmatpush1.bf16.msra.mxu0 %v699
        %897 = vmatprep.subr.bf16.mxu0 0
        %898 = vmatpush1.bf16.msra.mxu0 %v696
        %899 = vmatprep.subr.bf16.mxu0 0
        %900 = vmatpush1.bf16.msra.mxu0 %v693
        %901 = vmatprep.subr.bf16.mxu0 0
        %902 = vmatpush1.bf16.msra.mxu0 %v690
        %903 = vmatprep.subr.bf16.mxu0 0
        %904 = vmatpush1.bf16.msra.mxu0 %v687
        %905 = vmatprep.subr.bf16.mxu0 0
        %906 = vmatpush1.bf16.msra.mxu0 %v684
        %907 = vmatprep.subr.bf16.mxu0 0
        %908 = vmatpush2.bf16.msra.mxu0 %v729
        %909 = vmatprep.subr.bf16.mxu0 0
        %910 = vmatpush2.bf16.msra.mxu0 %v726
        %911 = vmatprep.subr.bf16.mxu0 0
        %912 = vmatpush2.bf16.msra.mxu0 %v723
        %913 = vmatprep.subr.bf16.mxu0 0
        %914 = vmatpush2.bf16.msra.mxu0 %v720
        %915 = vmatprep.subr.bf16.mxu0 0
        %916 = vmatpush2.bf16.msra.mxu0 %v717
        %917 = vmatprep.subr.bf16.mxu0 0
        %918 = vmatpush2.bf16.msra.mxu0 %v714
        %919 = vmatprep.subr.bf16.mxu0 0
        %920 = vmatpush2.bf16.msra.mxu0 %v711
        %921 = vmatprep.subr.bf16.mxu0 0
        %922 = vmatpush2.bf16.msra.mxu0 %v708
        %923 = vmatprep.mubr.bf16.mxu0 %v491
        %924 = vmatmul.mubr.bf16.gmra.mxu0 %v490
        %v925 = vpop.f32.mrf.mxu0
        %v926 = vadd.f32 %v438, %v925
        %v927 = vpop.f32.mrf.mxu0
        %v928 = vpop.f32.mrf.mxu0
        %v929 = vadd.f32 %v438, %v928
        %v930 = vpop.f32.mrf.mxu0
        %931 = vmatprep.mubr.bf16.mxu0 %v493
        %932 = vmatmul.mubr.bf16.gmra.mxu0 %v492
        %v933 = vpop.f32.mrf.mxu0
        %v934 = vadd.f32 %v438, %v933
        %v935 = vpop.f32.mrf.mxu0
        %v936 = vpop.f32.mrf.mxu0
        %v937 = vadd.f32 %v438, %v936
        %v938 = vpop.f32.mrf.mxu0
        %939 = vmatprep.mubr.bf16.mxu0 %v495
        %940 = vmatmul.mubr.bf16.gmra.mxu0 %v494
        %v941 = vpop.f32.mrf.mxu0
        %v942 = vadd.f32 %v438, %v941
        %v943 = vpop.f32.mrf.mxu0
        %v944 = vpop.f32.mrf.mxu0
        %v945 = vadd.f32 %v438, %v944
        %v946 = vpop.f32.mrf.mxu0
        %947 = vmatprep.mubr.bf16.mxu0 %v497
        %948 = vmatmul.mubr.bf16.gmra.mxu0 %v496
        %v949 = vpop.f32.mrf.mxu0
        %v950 = vadd.f32 %v438, %v949
        %v951 = vpop.f32.mrf.mxu0
        %v952 = vpop.f32.mrf.mxu0
        %v953 = vadd.f32 %v438, %v952
        %v954 = vpop.f32.mrf.mxu0
        %955 = vmatprep.mubr.bf16.mxu0 %v499
        %956 = vmatmul.mubr.bf16.gmra.mxu0 %v498
        %v957 = vpop.f32.mrf.mxu0
        %v958 = vadd.f32 %v438, %v957
        %v959 = vpop.f32.mrf.mxu0
        %v960 = vpop.f32.mrf.mxu0
        %v961 = vadd.f32 %v438, %v960
        %v962 = vpop.f32.mrf.mxu0
        %963 = vmatprep.mubr.bf16.mxu0 %v501
        %964 = vmatmul.mubr.bf16.gmra.mxu0 %v500
        %v965 = vpop.f32.mrf.mxu0
        %v966 = vadd.f32 %v438, %v965
        %v967 = vpop.f32.mrf.mxu0
        %v968 = vpop.f32.mrf.mxu0
        %v969 = vadd.f32 %v438, %v968
        %v970 = vpop.f32.mrf.mxu0
        %971 = vmatprep.mubr.bf16.mxu0 %v503
        %972 = vmatmul.mubr.bf16.gmra.mxu0 %v502
        %v973 = vpop.f32.mrf.mxu0
        %v974 = vadd.f32 %v438, %v973
        %v975 = vpop.f32.mrf.mxu0
        %v976 = vpop.f32.mrf.mxu0
        %v977 = vadd.f32 %v438, %v976
        %v978 = vpop.f32.mrf.mxu0
        %979 = vmatprep.mubr.bf16.mxu0 %v505
        %980 = vmatmul.mubr.bf16.gmra.mxu0 %v504
        %v981 = vpop.f32.mrf.mxu0
        %v982 = vadd.f32 %v438, %v981
        %v983 = vpop.f32.mrf.mxu0
        %v984 = vpop.f32.mrf.mxu0
        %v985 = vadd.f32 %v438, %v984
        %v986 = vpop.f32.mrf.mxu0
        %987 = vdwg.mxu0
        %v988 = vmax.f32 %v813, 0.0
        %v989 = vmax.f32 %v815, 0.0
        %v990 = vmax.f32 %v926, 0.0
        %v991 = vmax.f32 %v817, 0.0
        %v992 = vmax.f32 %v819, 0.0
        %v993 = vmax.f32 %v929, 0.0
        %v994 = vmax.f32 %v823, 0.0
        %v995 = vmax.f32 %v825, 0.0
        %v996 = vmax.f32 %v934, 0.0
        %v997 = vmax.f32 %v827, 0.0
        %v998 = vmax.f32 %v829, 0.0
        %v999 = vmax.f32 %v937, 0.0
        %v1000 = vmax.f32 %v833, 0.0
        %v1001 = vmax.f32 %v835, 0.0
        %v1002 = vmax.f32 %v942, 0.0
        %v1003 = vmax.f32 %v837, 0.0
        %v1004 = vmax.f32 %v839, 0.0
        %v1005 = vmax.f32 %v945, 0.0
        %v1006 = vmax.f32 %v843, 0.0
        %v1007 = vmax.f32 %v845, 0.0
        %v1008 = vmax.f32 %v950, 0.0
        %v1009 = vmax.f32 %v847, 0.0
        %v1010 = vmax.f32 %v849, 0.0
        %v1011 = vmax.f32 %v953, 0.0
        %v1012 = vmax.f32 %v853, 0.0
        %v1013 = vmax.f32 %v855, 0.0
        %v1014 = vmax.f32 %v958, 0.0
        %v1015 = vmax.f32 %v857, 0.0
        %v1016 = vmax.f32 %v859, 0.0
        %v1017 = vmax.f32 %v961, 0.0
        %v1018 = vmax.f32 %v863, 0.0
        %v1019 = vmax.f32 %v865, 0.0
        %v1020 = vmax.f32 %v966, 0.0
        %v1021 = vmax.f32 %v867, 0.0
        %v1022 = vmax.f32 %v869, 0.0
        %v1023 = vmax.f32 %v969, 0.0
        %v1024 = vmax.f32 %v873, 0.0
        %v1025 = vmax.f32 %v875, 0.0
        %v1026 = vmax.f32 %v974, 0.0
        %v1027 = vmax.f32 %v877, 0.0
        %v1028 = vmax.f32 %v879, 0.0
        %v1029 = vmax.f32 %v977, 0.0
        %v1030 = vmax.f32 %v883, 0.0
        %v1031 = vmax.f32 %v885, 0.0
        %v1032 = vmax.f32 %v982, 0.0
        %v1033 = vmax.f32 %v887, 0.0
        %v1034 = vmax.f32 %v889, 0.0
        %v1035 = vmax.f32 %v985, 0.0
        %v1036 = vpack.c.bf16 %v991, %v988
        %v1037 = vpack.c.bf16 %v992, %v989
        %v1038 = vpack.c.bf16 %v993, %v990
        %v1039 = vpack.c.bf16 %v997, %v994
        %v1040 = vpack.c.bf16 %v998, %v995
        %v1041 = vpack.c.bf16 %v999, %v996
        %v1042 = vpack.c.bf16 %v1003, %v1000
        %v1043 = vpack.c.bf16 %v1004, %v1001
        %v1044 = vpack.c.bf16 %v1005, %v1002
        %v1045 = vpack.c.bf16 %v1009, %v1006
        %v1046 = vpack.c.bf16 %v1010, %v1007
        %v1047 = vpack.c.bf16 %v1011, %v1008
        %v1048 = vpack.c.bf16 %v1015, %v1012
        %v1049 = vpack.c.bf16 %v1016, %v1013
        %v1050 = vpack.c.bf16 %v1017, %v1014
        %v1051 = vpack.c.bf16 %v1021, %v1018
        %v1052 = vpack.c.bf16 %v1022, %v1019
        %v1053 = vpack.c.bf16 %v1023, %v1020
        %v1054 = vpack.c.bf16 %v1027, %v1024
        %v1055 = vpack.c.bf16 %v1028, %v1025
        %v1056 = vpack.c.bf16 %v1029, %v1026
        %v1057 = vpack.c.bf16 %v1033, %v1030
        %v1058 = vpack.c.bf16 %v1034, %v1031
        %v1059 = vpack.c.bf16 %v1035, %v1032
        %v1060 = vld [vmem:[#allocation7] sm:$0xff]
        %v1061 = vld [vmem:[#allocation7 + $0x8] sm:$0xf]
        %v1062 = vld [vmem:[#allocation7 + $0xc] sm:$0xff]
        %v1063 = vld [vmem:[#allocation7 + $0x14] sm:$0xf]
        %v1064 = vld [vmem:[#allocation7 + $0x18] sm:$0xff]
        %v1065 = vld [vmem:[#allocation7 + $0x20] sm:$0xf]
        %v1066 = vld [vmem:[#allocation7 + $0x24] sm:$0xff]
        %v1067 = vld [vmem:[#allocation7 + $0x2c] sm:$0xf]
        %v1068 = vld [vmem:[#allocation7 + $0x30] sm:$0xff]
        %v1069 = vld [vmem:[#allocation7 + $0x38] sm:$0xf]
        %v1070 = vld [vmem:[#allocation7 + $0x3c] sm:$0xff]
        %v1071 = vld [vmem:[#allocation7 + $0x44] sm:$0xf]
        %v1072 = vld [vmem:[#allocation7 + $0x48] sm:$0xff]
        %v1073 = vld [vmem:[#allocation7 + $0x50] sm:$0xf]
        %v1074 = vld [vmem:[#allocation7 + $0x54] sm:$0xff]
        %v1075 = vld [vmem:[#allocation7 + $0x5c] sm:$0xf]
        %v1076 = vld [vmem:[#allocation7 + $0x60] sm:$0xff]
        %v1077 = vld [vmem:[#allocation7 + $0x68] sm:$0xf]
        %v1078 = vld [vmem:[#allocation7 + $0x6c] sm:$0xff]
        %v1079 = vld [vmem:[#allocation7 + $0x74] sm:$0xf]
        %v1080 = vld [vmem:[#allocation7 + $0x78] sm:$0xff]
        %v1081 = vld [vmem:[#allocation7 + $0x80] sm:$0xf]
        %v1082 = vld [vmem:[#allocation7 + $0x84] sm:$0xff]
        %v1083 = vld [vmem:[#allocation7 + $0x8c] sm:$0xf]
        %v1084 = vld [vmem:[#allocation7 + $0x90] sm:$0xff]
        %v1085 = vld [vmem:[#allocation7 + $0x98] sm:$0xf]
        %v1086 = vld [vmem:[#allocation7 + $0x9c] sm:$0xff]
        %v1087 = vld [vmem:[#allocation7 + $0xa4] sm:$0xf]
        %v1088 = vld [vmem:[#allocation7 + $0xa8] sm:$0xff]
        %v1089 = vld [vmem:[#allocation7 + $0xb0] sm:$0xf]
        %v1090 = vld [vmem:[#allocation7 + $0xb4] sm:$0xff]
        %v1091 = vld [vmem:[#allocation7 + $0xbc] sm:$0xf]
        %v1092 = vld [vmem:[#allocation7 + $0xc0] sm:$0xff]
        %v1093 = vld [vmem:[#allocation7 + $0xc8] sm:$0xf]
        %v1094 = vld [vmem:[#allocation7 + $0xcc] sm:$0xff]
        %v1095 = vld [vmem:[#allocation7 + $0xd4] sm:$0xf]
        %v1096 = vld [vmem:[#allocation7 + $0xd8] sm:$0xff]
        %v1097 = vld [vmem:[#allocation7 + $0xe0] sm:$0xf]
        %v1098 = vld [vmem:[#allocation7 + $0xe4] sm:$0xff]
        %v1099 = vld [vmem:[#allocation7 + $0xec] sm:$0xf]
        %v1100 = vld [vmem:[#allocation7 + $0xf0] sm:$0xff]
        %v1101 = vld [vmem:[#allocation7 + $0xf8] sm:$0xf]
        %v1102 = vld [vmem:[#allocation7 + $0xfc] sm:$0xff]
        %v1103 = vld [vmem:[#allocation7 + $0x104] sm:$0xf]
        %v1104 = vld [vmem:[#allocation7 + $0x108] sm:$0xff]
        %v1105 = vld [vmem:[#allocation7 + $0x110] sm:$0xf]
        %v1106 = vld [vmem:[#allocation7 + $0x114] sm:$0xff]
        %v1107 = vld [vmem:[#allocation7 + $0x11c] sm:$0xf]
        %v1108 = vld [vmem:[#allocation7 + $0x120] sm:$0xff]
        %v1109 = vld [vmem:[#allocation7 + $0x128] sm:$0xf]
        %v1110 = vld [vmem:[#allocation7 + $0x12c] sm:$0xff]
        %v1111 = vld [vmem:[#allocation7 + $0x134] sm:$0xf]
        %v1112 = vld [vmem:[#allocation7 + $0x138] sm:$0xff]
        %v1113 = vld [vmem:[#allocation7 + $0x140] sm:$0xf]
        %v1114 = vld [vmem:[#allocation7 + $0x144] sm:$0xff]
        %v1115 = vld [vmem:[#allocation7 + $0x14c] sm:$0xf]
        %v1116 = vld [vmem:[#allocation7 + $0x150] sm:$0xff]
        %v1117 = vld [vmem:[#allocation7 + $0x158] sm:$0xf]
        %v1118 = vld [vmem:[#allocation7 + $0x15c] sm:$0xff]
        %v1119 = vld [vmem:[#allocation7 + $0x164] sm:$0xf]
        %v1120 = vld [vmem:[#allocation7 + $0x168] sm:$0xff]
        %v1121 = vld [vmem:[#allocation7 + $0x170] sm:$0xf]
        %v1122 = vld [vmem:[#allocation7 + $0x174] sm:$0xff]
        %v1123 = vld [vmem:[#allocation7 + $0x17c] sm:$0xf]
        %v1124 = vld [vmem:[#allocation7 + $0x180] sm:$0xff]
        %v1125 = vld [vmem:[#allocation7 + $0x188] sm:$0xf]
        %v1126 = vld [vmem:[#allocation7 + $0x18c] sm:$0xff]
        %v1127 = vld [vmem:[#allocation7 + $0x194] sm:$0xf]
        %v1128 = vld [vmem:[#allocation7 + $0x198] sm:$0xff]
        %v1129 = vld [vmem:[#allocation7 + $0x1a0] sm:$0xf]
        %v1130 = vld [vmem:[#allocation7 + $0x1a4] sm:$0xff]
        %v1131 = vld [vmem:[#allocation7 + $0x1ac] sm:$0xf]
        %v1132 = vld [vmem:[#allocation7 + $0x1b0] sm:$0xff]
        %v1133 = vld [vmem:[#allocation7 + $0x1b8] sm:$0xf]
        %v1134 = vld [vmem:[#allocation7 + $0x1bc] sm:$0xff]
        %v1135 = vld [vmem:[#allocation7 + $0x1c4] sm:$0xf]
        %v1136 = vld [vmem:[#allocation7 + $0x1c8] sm:$0xff]
        %v1137 = vld [vmem:[#allocation7 + $0x1d0] sm:$0xf]
        %v1138 = vld [vmem:[#allocation7 + $0x1d4] sm:$0xff]
        %v1139 = vld [vmem:[#allocation7 + $0x1dc] sm:$0xf]
        %v1140 = vld [vmem:[#allocation7 + $0x1e0] sm:$0xff]
        %v1141 = vld [vmem:[#allocation7 + $0x1e8] sm:$0xf]
        %v1142 = vld [vmem:[#allocation7 + $0x1ec] sm:$0xff]
        %v1143 = vld [vmem:[#allocation7 + $0x1f4] sm:$0xf]
        %v1144 = vld [vmem:[#allocation7 + $0x1f8] sm:$0xff]
        %v1145 = vld [vmem:[#allocation7 + $0x200] sm:$0xf]
        %v1146 = vld [vmem:[#allocation7 + $0x204] sm:$0xff]
        %v1147 = vld [vmem:[#allocation7 + $0x20c] sm:$0xf]
        %v1148 = vld [vmem:[#allocation7 + $0x210] sm:$0xff]
        %v1149 = vld [vmem:[#allocation7 + $0x218] sm:$0xf]
        %v1150 = vld [vmem:[#allocation7 + $0x21c] sm:$0xff]
        %v1151 = vld [vmem:[#allocation7 + $0x224] sm:$0xf]
        %v1152 = vld [vmem:[#allocation7 + $0x228] sm:$0xff]
        %v1153 = vld [vmem:[#allocation7 + $0x230] sm:$0xf]
        %v1154 = vld [vmem:[#allocation7 + $0x234] sm:$0xff]
        %v1155 = vld [vmem:[#allocation7 + $0x23c] sm:$0xf]
        %v1156 = vld [vmem:[%s4] sm:$0x7]
        %v1158 = vlaneseq
        %v1159 = vshrl.u32 %v1158, 7
        %v1160 = vsub.s32 0, %v1159
        %v1161 = vrot.slane %v1156, %v1160
        %v1162 = vlaneseq
        %v1163 = vshrl.u32 %v1162, 7
        %v1164 = vsub.s32 1, %v1163
        %v1165 = vrot.slane %v1156, %v1164
        %v1166 = vlaneseq
        %v1167 = vshrl.u32 %v1166, 7
        %v1168 = vsub.s32 2, %v1167
        %v1169 = vrot.slane %v1156, %v1168
        %v1269 = vunpack.c.l.b16 %v1060
        %v1270 = vunpack.c.h.b16 %v1060
        %v1271 = vunpack.c.l.b16 %v1061
        %v1272 = vunpack.c.l.b16 %v1062
        %v1273 = vunpack.c.h.b16 %v1062
        %v1274 = vunpack.c.l.b16 %v1063
        %v1275 = vunpack.c.l.b16 %v1064
        %v1276 = vunpack.c.h.b16 %v1064
        %v1277 = vunpack.c.l.b16 %v1065
        %v1278 = vunpack.c.l.b16 %v1066
        %v1279 = vunpack.c.h.b16 %v1066
        %v1280 = vunpack.c.l.b16 %v1067
        %v1281 = vunpack.c.l.b16 %v1068
        %v1282 = vunpack.c.h.b16 %v1068
        %v1283 = vunpack.c.l.b16 %v1069
        %v1284 = vunpack.c.l.b16 %v1070
        %v1285 = vunpack.c.h.b16 %v1070
        %v1286 = vunpack.c.l.b16 %v1071
        %v1287 = vunpack.c.l.b16 %v1072
        %v1288 = vunpack.c.h.b16 %v1072
        %v1289 = vunpack.c.l.b16 %v1073
        %v1290 = vunpack.c.l.b16 %v1074
        %v1291 = vunpack.c.h.b16 %v1074
        %v1292 = vunpack.c.l.b16 %v1075
        %v1293 = vunpack.c.l.b16 %v1076
        %v1294 = vunpack.c.h.b16 %v1076
        %v1295 = vunpack.c.l.b16 %v1077
        %v1296 = vunpack.c.l.b16 %v1078
        %v1297 = vunpack.c.h.b16 %v1078
        %v1298 = vunpack.c.l.b16 %v1079
        %v1299 = vunpack.c.l.b16 %v1080
        %v1300 = vunpack.c.h.b16 %v1080
        %v1301 = vunpack.c.l.b16 %v1081
        %v1302 = vunpack.c.l.b16 %v1082
        %v1303 = vunpack.c.h.b16 %v1082
        %v1304 = vunpack.c.l.b16 %v1083
        %v1305 = vunpack.c.l.b16 %v1084
        %v1306 = vunpack.c.h.b16 %v1084
        %v1307 = vunpack.c.l.b16 %v1085
        %v1308 = vunpack.c.l.b16 %v1086
        %v1309 = vunpack.c.h.b16 %v1086
        %v1310 = vunpack.c.l.b16 %v1087
        %v1311 = vunpack.c.l.b16 %v1088
        %v1312 = vunpack.c.h.b16 %v1088
        %v1313 = vunpack.c.l.b16 %v1089
        %v1314 = vunpack.c.l.b16 %v1090
        %v1315 = vunpack.c.h.b16 %v1090
        %v1316 = vunpack.c.l.b16 %v1091
        %v1317 = vunpack.c.l.b16 %v1092
        %v1318 = vunpack.c.h.b16 %v1092
        %v1319 = vunpack.c.l.b16 %v1093
        %v1320 = vunpack.c.l.b16 %v1094
        %v1321 = vunpack.c.h.b16 %v1094
        %v1322 = vunpack.c.l.b16 %v1095
        %v1323 = vunpack.c.l.b16 %v1096
        %v1324 = vunpack.c.h.b16 %v1096
        %v1325 = vunpack.c.l.b16 %v1097
        %v1326 = vunpack.c.l.b16 %v1098
        %v1327 = vunpack.c.h.b16 %v1098
        %v1328 = vunpack.c.l.b16 %v1099
        %v1329 = vunpack.c.l.b16 %v1100
        %v1330 = vunpack.c.h.b16 %v1100
        %v1331 = vunpack.c.l.b16 %v1101
        %v1332 = vunpack.c.l.b16 %v1102
        %v1333 = vunpack.c.h.b16 %v1102
        %v1334 = vunpack.c.l.b16 %v1103
        %v1335 = vunpack.c.l.b16 %v1104
        %v1336 = vunpack.c.h.b16 %v1104
        %v1337 = vunpack.c.l.b16 %v1105
        %v1338 = vunpack.c.l.b16 %v1106
        %v1339 = vunpack.c.h.b16 %v1106
        %v1340 = vunpack.c.l.b16 %v1107
        %v1341 = vunpack.c.l.b16 %v1108
        %v1342 = vunpack.c.h.b16 %v1108
        %v1343 = vunpack.c.l.b16 %v1109
        %v1344 = vunpack.c.l.b16 %v1110
        %v1345 = vunpack.c.h.b16 %v1110
        %v1346 = vunpack.c.l.b16 %v1111
        %v1347 = vunpack.c.l.b16 %v1112
        %v1348 = vunpack.c.h.b16 %v1112
        %v1349 = vunpack.c.l.b16 %v1113
        %v1350 = vunpack.c.l.b16 %v1114
        %v1351 = vunpack.c.h.b16 %v1114
        %v1352 = vunpack.c.l.b16 %v1115
        %v1353 = vunpack.c.l.b16 %v1116
        %v1354 = vunpack.c.h.b16 %v1116
        %v1355 = vunpack.c.l.b16 %v1117
        %v1356 = vunpack.c.l.b16 %v1118
        %v1357 = vunpack.c.h.b16 %v1118
        %v1358 = vunpack.c.l.b16 %v1119
        %v1359 = vunpack.c.l.b16 %v1120
        %v1360 = vunpack.c.h.b16 %v1120
        %v1361 = vunpack.c.l.b16 %v1121
        %v1362 = vunpack.c.l.b16 %v1122
        %v1363 = vunpack.c.h.b16 %v1122
        %v1364 = vunpack.c.l.b16 %v1123
        %v1365 = vunpack.c.l.b16 %v1124
        %v1366 = vunpack.c.h.b16 %v1124
        %v1367 = vunpack.c.l.b16 %v1125
        %v1368 = vunpack.c.l.b16 %v1126
        %v1369 = vunpack.c.h.b16 %v1126
        %v1370 = vunpack.c.l.b16 %v1127
        %v1371 = vunpack.c.l.b16 %v1128
        %v1372 = vunpack.c.h.b16 %v1128
        %v1373 = vunpack.c.l.b16 %v1129
        %v1374 = vunpack.c.l.b16 %v1130
        %v1375 = vunpack.c.h.b16 %v1130
        %v1376 = vunpack.c.l.b16 %v1131
        %v1377 = vunpack.c.l.b16 %v1132
        %v1378 = vunpack.c.h.b16 %v1132
        %v1379 = vunpack.c.l.b16 %v1133
        %v1380 = vunpack.c.l.b16 %v1134
        %v1381 = vunpack.c.h.b16 %v1134
        %v1382 = vunpack.c.l.b16 %v1135
        %v1383 = vunpack.c.l.b16 %v1136
        %v1384 = vunpack.c.h.b16 %v1136
        %v1385 = vunpack.c.l.b16 %v1137
        %v1386 = vunpack.c.l.b16 %v1138
        %v1387 = vunpack.c.h.b16 %v1138
        %v1388 = vunpack.c.l.b16 %v1139
        %v1389 = vunpack.c.l.b16 %v1140
        %v1390 = vunpack.c.h.b16 %v1140
        %v1391 = vunpack.c.l.b16 %v1141
        %v1392 = vunpack.c.l.b16 %v1142
        %v1393 = vunpack.c.h.b16 %v1142
        %v1394 = vunpack.c.l.b16 %v1143
        %v1395 = vunpack.c.l.b16 %v1144
        %v1396 = vunpack.c.h.b16 %v1144
        %v1397 = vunpack.c.l.b16 %v1145
        %v1398 = vunpack.c.l.b16 %v1146
        %v1399 = vunpack.c.h.b16 %v1146
        %v1400 = vunpack.c.l.b16 %v1147
        %v1401 = vunpack.c.l.b16 %v1148
        %v1402 = vunpack.c.h.b16 %v1148
        %v1403 = vunpack.c.l.b16 %v1149
        %v1404 = vunpack.c.l.b16 %v1150
        %v1405 = vunpack.c.h.b16 %v1150
        %v1406 = vunpack.c.l.b16 %v1151
        %v1407 = vunpack.c.l.b16 %v1152
        %v1408 = vunpack.c.h.b16 %v1152
        %v1409 = vunpack.c.l.b16 %v1153
        %v1410 = vunpack.c.l.b16 %v1154
        %v1411 = vunpack.c.h.b16 %v1154
        %v1412 = vunpack.c.l.b16 %v1155
        %v1413 = vpack.c.b16 %v1272, %v1269
        %v1414 = vpack.c.b16 %v1273, %v1270
        %v1415 = vpack.c.b16 %v1274, %v1271
        %v1416 = vpack.c.b16 %v1278, %v1275
        %v1417 = vpack.c.b16 %v1279, %v1276
        %v1418 = vpack.c.b16 %v1280, %v1277
        %v1419 = vpack.c.b16 %v1284, %v1281
        %v1420 = vpack.c.b16 %v1285, %v1282
        %v1421 = vpack.c.b16 %v1286, %v1283
        %v1422 = vpack.c.b16 %v1290, %v1287
        %v1423 = vpack.c.b16 %v1291, %v1288
        %v1424 = vpack.c.b16 %v1292, %v1289
        %v1425 = vpack.c.b16 %v1296, %v1293
        %v1426 = vpack.c.b16 %v1297, %v1294
        %v1427 = vpack.c.b16 %v1298, %v1295
        %v1428 = vpack.c.b16 %v1302, %v1299
        %v1429 = vpack.c.b16 %v1303, %v1300
        %v1430 = vpack.c.b16 %v1304, %v1301
        %v1431 = vpack.c.b16 %v1308, %v1305
        %v1432 = vpack.c.b16 %v1309, %v1306
        %v1433 = vpack.c.b16 %v1310, %v1307
        %v1434 = vpack.c.b16 %v1314, %v1311
        %v1435 = vpack.c.b16 %v1315, %v1312
        %v1436 = vpack.c.b16 %v1316, %v1313
        %v1437 = vpack.c.b16 %v1320, %v1317
        %v1438 = vpack.c.b16 %v1321, %v1318
        %v1439 = vpack.c.b16 %v1322, %v1319
        %v1440 = vpack.c.b16 %v1326, %v1323
        %v1441 = vpack.c.b16 %v1327, %v1324
        %v1442 = vpack.c.b16 %v1328, %v1325
        %v1443 = vpack.c.b16 %v1332, %v1329
        %v1444 = vpack.c.b16 %v1333, %v1330
        %v1445 = vpack.c.b16 %v1334, %v1331
        %v1446 = vpack.c.b16 %v1338, %v1335
        %v1447 = vpack.c.b16 %v1339, %v1336
        %v1448 = vpack.c.b16 %v1340, %v1337
        %v1449 = vpack.c.b16 %v1344, %v1341
        %v1450 = vpack.c.b16 %v1345, %v1342
        %v1451 = vpack.c.b16 %v1346, %v1343
        %v1452 = vpack.c.b16 %v1350, %v1347
        %v1453 = vpack.c.b16 %v1351, %v1348
        %v1454 = vpack.c.b16 %v1352, %v1349
        %v1455 = vpack.c.b16 %v1356, %v1353
        %v1456 = vpack.c.b16 %v1357, %v1354
        %v1457 = vpack.c.b16 %v1358, %v1355
        %v1458 = vpack.c.b16 %v1362, %v1359
        %v1459 = vpack.c.b16 %v1363, %v1360
        %v1460 = vpack.c.b16 %v1364, %v1361
        %v1461 = vpack.c.b16 %v1368, %v1365
        %v1462 = vpack.c.b16 %v1369, %v1366
        %v1463 = vpack.c.b16 %v1370, %v1367
        %v1464 = vpack.c.b16 %v1374, %v1371
        %v1465 = vpack.c.b16 %v1375, %v1372
        %v1466 = vpack.c.b16 %v1376, %v1373
        %v1467 = vpack.c.b16 %v1380, %v1377
        %v1468 = vpack.c.b16 %v1381, %v1378
        %v1469 = vpack.c.b16 %v1382, %v1379
        %v1470 = vpack.c.b16 %v1386, %v1383
        %v1471 = vpack.c.b16 %v1387, %v1384
        %v1472 = vpack.c.b16 %v1388, %v1385
        %v1473 = vpack.c.b16 %v1392, %v1389
        %v1474 = vpack.c.b16 %v1393, %v1390
        %v1475 = vpack.c.b16 %v1394, %v1391
        %v1476 = vpack.c.b16 %v1398, %v1395
        %v1477 = vpack.c.b16 %v1399, %v1396
        %v1478 = vpack.c.b16 %v1400, %v1397
        %v1479 = vpack.c.b16 %v1404, %v1401
        %v1480 = vpack.c.b16 %v1405, %v1402
        %v1481 = vpack.c.b16 %v1406, %v1403
        %v1482 = vpack.c.b16 %v1410, %v1407
        %v1483 = vpack.c.b16 %v1411, %v1408
        %v1484 = vpack.c.b16 %v1412, %v1409
        %1557 = vmatprep.subr.bf16.mxu0 %v1435
        %1558 = vmatpush1.bf16.msra.mxu0 %v1434
        %1559 = vmatprep.subr.bf16.mxu0 %v1432
        %1560 = vmatpush1.bf16.msra.mxu0 %v1431
        %1561 = vmatprep.subr.bf16.mxu0 %v1429
        %1562 = vmatpush1.bf16.msra.mxu0 %v1428
        %1563 = vmatprep.subr.bf16.mxu0 %v1426
        %1564 = vmatpush1.bf16.msra.mxu0 %v1425
        %1565 = vmatprep.subr.bf16.mxu0 %v1423
        %1566 = vmatpush1.bf16.msra.mxu0 %v1422
        %1567 = vmatprep.subr.bf16.mxu0 %v1420
        %1568 = vmatpush1.bf16.msra.mxu0 %v1419
        %1569 = vmatprep.subr.bf16.mxu0 %v1417
        %1570 = vmatpush1.bf16.msra.mxu0 %v1416
        %1571 = vmatprep.subr.bf16.mxu0 %v1414
        %1572 = vmatpush1.bf16.msra.mxu0 %v1413
        %1573 = vmatprep.subr.bf16.mxu0 %v1459
        %1574 = vmatpush2.bf16.msra.mxu0 %v1458
        %1575 = vmatprep.subr.bf16.mxu0 %v1456
        %1576 = vmatpush2.bf16.msra.mxu0 %v1455
        %1577 = vmatprep.subr.bf16.mxu0 %v1453
        %1578 = vmatpush2.bf16.msra.mxu0 %v1452
        %1579 = vmatprep.subr.bf16.mxu0 %v1450
        %1580 = vmatpush2.bf16.msra.mxu0 %v1449
        %1581 = vmatprep.subr.bf16.mxu0 %v1447
        %1582 = vmatpush2.bf16.msra.mxu0 %v1446
        %1583 = vmatprep.subr.bf16.mxu0 %v1444
        %1584 = vmatpush2.bf16.msra.mxu0 %v1443
        %1585 = vmatprep.subr.bf16.mxu0 %v1441
        %1586 = vmatpush2.bf16.msra.mxu0 %v1440
        %1587 = vmatprep.subr.bf16.mxu0 %v1438
        %1588 = vmatpush2.bf16.msra.mxu0 %v1437
        %1589 = vmatprep.mubr.bf16.mxu0 %v1037
        %1590 = vmatmul.mubr.bf16.gmra.mxu0 %v1036
        %v1591 = vpop.f32.mrf.mxu0
        %v1592 = vadd.f32 %v1161, %v1591
        %v1593 = vpop.f32.mrf.mxu0
        %v1594 = vadd.f32 %v1165, %v1593
        %v1595 = vpop.f32.mrf.mxu0
        %v1596 = vadd.f32 %v1161, %v1595
        %v1597 = vpop.f32.mrf.mxu0
        %v1598 = vadd.f32 %v1165, %v1597
        %1599 = vmatprep.mubr.bf16.mxu0 %v1040
        %1600 = vmatmul.mubr.bf16.gmra.mxu0 %v1039
        %v1601 = vpop.f32.mrf.mxu0
        %v1602 = vadd.f32 %v1161, %v1601
        %v1603 = vpop.f32.mrf.mxu0
        %v1604 = vadd.f32 %v1165, %v1603
        %v1605 = vpop.f32.mrf.mxu0
        %v1606 = vadd.f32 %v1161, %v1605
        %v1607 = vpop.f32.mrf.mxu0
        %v1608 = vadd.f32 %v1165, %v1607
        %1609 = vmatprep.mubr.bf16.mxu0 %v1043
        %1610 = vmatmul.mubr.bf16.gmra.mxu0 %v1042
        %v1611 = vpop.f32.mrf.mxu0
        %v1612 = vadd.f32 %v1161, %v1611
        %v1613 = vpop.f32.mrf.mxu0
        %v1614 = vadd.f32 %v1165, %v1613
        %v1615 = vpop.f32.mrf.mxu0
        %v1616 = vadd.f32 %v1161, %v1615
        %v1617 = vpop.f32.mrf.mxu0
        %v1618 = vadd.f32 %v1165, %v1617
        %1619 = vmatprep.mubr.bf16.mxu0 %v1046
        %1620 = vmatmul.mubr.bf16.gmra.mxu0 %v1045
        %v1621 = vpop.f32.mrf.mxu0
        %v1622 = vadd.f32 %v1161, %v1621
        %v1623 = vpop.f32.mrf.mxu0
        %v1624 = vadd.f32 %v1165, %v1623
        %v1625 = vpop.f32.mrf.mxu0
        %v1626 = vadd.f32 %v1161, %v1625
        %v1627 = vpop.f32.mrf.mxu0
        %v1628 = vadd.f32 %v1165, %v1627
        %1629 = vmatprep.mubr.bf16.mxu0 %v1049
        %1630 = vmatmul.mubr.bf16.gmra.mxu0 %v1048
        %v1631 = vpop.f32.mrf.mxu0
        %v1632 = vadd.f32 %v1161, %v1631
        %v1633 = vpop.f32.mrf.mxu0
        %v1634 = vadd.f32 %v1165, %v1633
        %v1635 = vpop.f32.mrf.mxu0
        %v1636 = vadd.f32 %v1161, %v1635
        %v1637 = vpop.f32.mrf.mxu0
        %v1638 = vadd.f32 %v1165, %v1637
        %1639 = vmatprep.mubr.bf16.mxu0 %v1052
        %1640 = vmatmul.mubr.bf16.gmra.mxu0 %v1051
        %v1641 = vpop.f32.mrf.mxu0
        %v1642 = vadd.f32 %v1161, %v1641
        %v1643 = vpop.f32.mrf.mxu0
        %v1644 = vadd.f32 %v1165, %v1643
        %v1645 = vpop.f32.mrf.mxu0
        %v1646 = vadd.f32 %v1161, %v1645
        %v1647 = vpop.f32.mrf.mxu0
        %v1648 = vadd.f32 %v1165, %v1647
        %1649 = vmatprep.mubr.bf16.mxu0 %v1055
        %1650 = vmatmul.mubr.bf16.gmra.mxu0 %v1054
        %v1651 = vpop.f32.mrf.mxu0
        %v1652 = vadd.f32 %v1161, %v1651
        %v1653 = vpop.f32.mrf.mxu0
        %v1654 = vadd.f32 %v1165, %v1653
        %v1655 = vpop.f32.mrf.mxu0
        %v1656 = vadd.f32 %v1161, %v1655
        %v1657 = vpop.f32.mrf.mxu0
        %v1658 = vadd.f32 %v1165, %v1657
        %1659 = vmatprep.mubr.bf16.mxu0 %v1058
        %1660 = vmatmul.mubr.bf16.gmra.mxu0 %v1057
        %v1661 = vpop.f32.mrf.mxu0
        %v1662 = vadd.f32 %v1161, %v1661
        %v1663 = vpop.f32.mrf.mxu0
        %v1664 = vadd.f32 %v1165, %v1663
        %v1665 = vpop.f32.mrf.mxu0
        %v1666 = vadd.f32 %v1161, %v1665
        %v1667 = vpop.f32.mrf.mxu0
        %v1668 = vadd.f32 %v1165, %v1667
        %1669 = vdwg.mxu0
        %1670 = vmatprep.subr.bf16.mxu0 %v1483
        %1671 = vmatpush1.bf16.msra.mxu0 %v1482
        %1672 = vmatprep.subr.bf16.mxu0 %v1480
        %1673 = vmatpush1.bf16.msra.mxu0 %v1479
        %1674 = vmatprep.subr.bf16.mxu0 %v1477
        %1675 = vmatpush1.bf16.msra.mxu0 %v1476
        %1676 = vmatprep.subr.bf16.mxu0 %v1474
        %1677 = vmatpush1.bf16.msra.mxu0 %v1473
        %1678 = vmatprep.subr.bf16.mxu0 %v1471
        %1679 = vmatpush1.bf16.msra.mxu0 %v1470
        %1680 = vmatprep.subr.bf16.mxu0 %v1468
        %1681 = vmatpush1.bf16.msra.mxu0 %v1467
        %1682 = vmatprep.subr.bf16.mxu0 %v1465
        %1683 = vmatpush1.bf16.msra.mxu0 %v1464
        %1684 = vmatprep.subr.bf16.mxu0 %v1462
        %1685 = vmatpush1.bf16.msra.mxu0 %v1461
        %1686 = vmatprep.subr.bf16.mxu0 0
        %1687 = vmatpush2.bf16.msra.mxu0 0
        %1688 = vmatprep.subr.bf16.mxu0 0
        %1689 = vmatpush2.bf16.msra.mxu0 0
        %1690 = vmatprep.subr.bf16.mxu0 0
        %1691 = vmatpush2.bf16.msra.mxu0 0
        %1692 = vmatprep.subr.bf16.mxu0 0
        %1693 = vmatpush2.bf16.msra.mxu0 0
        %1694 = vmatprep.subr.bf16.mxu0 0
        %1695 = vmatpush2.bf16.msra.mxu0 0
        %1696 = vmatprep.subr.bf16.mxu0 0
        %1697 = vmatpush2.bf16.msra.mxu0 0
        %1698 = vmatprep.subr.bf16.mxu0 0
        %1699 = vmatpush2.bf16.msra.mxu0 0
        %1700 = vmatprep.subr.bf16.mxu0 0
        %1701 = vmatpush2.bf16.msra.mxu0 0
        %1702 = vmatprep.mubr.bf16.mxu0 0
        %1703 = vmatmul.mubr.bf16.gmra.mxu0 %v1038
        %v1704 = vpop.f32.mrf.mxu0
        %v1705 = vadd.f32 %v1592, %v1704
        %v1706 = vpop.f32.mrf.mxu0
        %v1707 = vadd.f32 %v1594, %v1706
        %v1708 = vpop.f32.mrf.mxu0
        %v1709 = vadd.f32 %v1596, %v1708
        %v1710 = vpop.f32.mrf.mxu0
        %v1711 = vadd.f32 %v1598, %v1710
        %1712 = vmatprep.mubr.bf16.mxu0 0
        %1713 = vmatmul.mubr.bf16.gmra.mxu0 %v1041
        %v1714 = vpop.f32.mrf.mxu0
        %v1715 = vadd.f32 %v1602, %v1714
        %v1716 = vpop.f32.mrf.mxu0
        %v1717 = vadd.f32 %v1604, %v1716
        %v1718 = vpop.f32.mrf.mxu0
        %v1719 = vadd.f32 %v1606, %v1718
        %v1720 = vpop.f32.mrf.mxu0
        %v1721 = vadd.f32 %v1608, %v1720
        %1722 = vmatprep.mubr.bf16.mxu0 0
        %1723 = vmatmul.mubr.bf16.gmra.mxu0 %v1044
        %v1724 = vpop.f32.mrf.mxu0
        %v1725 = vadd.f32 %v1612, %v1724
        %v1726 = vpop.f32.mrf.mxu0
        %v1727 = vadd.f32 %v1614, %v1726
        %v1728 = vpop.f32.mrf.mxu0
        %v1729 = vadd.f32 %v1616, %v1728
        %v1730 = vpop.f32.mrf.mxu0
        %v1731 = vadd.f32 %v1618, %v1730
        %1732 = vmatprep.mubr.bf16.mxu0 0
        %1733 = vmatmul.mubr.bf16.gmra.mxu0 %v1047
        %v1734 = vpop.f32.mrf.mxu0
        %v1735 = vadd.f32 %v1622, %v1734
        %v1736 = vpop.f32.mrf.mxu0
        %v1737 = vadd.f32 %v1624, %v1736
        %v1738 = vpop.f32.mrf.mxu0
        %v1739 = vadd.f32 %v1626, %v1738
        %v1740 = vpop.f32.mrf.mxu0
        %v1741 = vadd.f32 %v1628, %v1740
        %1742 = vmatprep.mubr.bf16.mxu0 0
        %1743 = vmatmul.mubr.bf16.gmra.mxu0 %v1050
        %v1744 = vpop.f32.mrf.mxu0
        %v1745 = vadd.f32 %v1632, %v1744
        %v1746 = vpop.f32.mrf.mxu0
        %v1747 = vadd.f32 %v1634, %v1746
        %v1748 = vpop.f32.mrf.mxu0
        %v1749 = vadd.f32 %v1636, %v1748
        %v1750 = vpop.f32.mrf.mxu0
        %v1751 = vadd.f32 %v1638, %v1750
        %1752 = vmatprep.mubr.bf16.mxu0 0
        %1753 = vmatmul.mubr.bf16.gmra.mxu0 %v1053
        %v1754 = vpop.f32.mrf.mxu0
        %v1755 = vadd.f32 %v1642, %v1754
        %v1756 = vpop.f32.mrf.mxu0
        %v1757 = vadd.f32 %v1644, %v1756
        %v1758 = vpop.f32.mrf.mxu0
        %v1759 = vadd.f32 %v1646, %v1758
        %v1760 = vpop.f32.mrf.mxu0
        %v1761 = vadd.f32 %v1648, %v1760
        %1762 = vmatprep.mubr.bf16.mxu0 0
        %1763 = vmatmul.mubr.bf16.gmra.mxu0 %v1056
        %v1764 = vpop.f32.mrf.mxu0
        %v1765 = vadd.f32 %v1652, %v1764
        %v1766 = vpop.f32.mrf.mxu0
        %v1767 = vadd.f32 %v1654, %v1766
        %v1768 = vpop.f32.mrf.mxu0
        %v1769 = vadd.f32 %v1656, %v1768
        %v1770 = vpop.f32.mrf.mxu0
        %v1771 = vadd.f32 %v1658, %v1770
        %1772 = vmatprep.mubr.bf16.mxu0 0
        %1773 = vmatmul.mubr.bf16.gmra.mxu0 %v1059
        %v1774 = vpop.f32.mrf.mxu0
        %v1775 = vadd.f32 %v1662, %v1774
        %v1776 = vpop.f32.mrf.mxu0
        %v1777 = vadd.f32 %v1664, %v1776
        %v1778 = vpop.f32.mrf.mxu0
        %v1779 = vadd.f32 %v1666, %v1778
        %v1780 = vpop.f32.mrf.mxu0
        %v1781 = vadd.f32 %v1668, %v1780
        %1782 = vdwg.mxu0
        %1783 = vmatprep.subr.bf16.mxu0 0
        %1784 = vmatpush1.bf16.msra.mxu0 %v1436
        %1785 = vmatprep.subr.bf16.mxu0 0
        %1786 = vmatpush1.bf16.msra.mxu0 %v1433
        %1787 = vmatprep.subr.bf16.mxu0 0
        %1788 = vmatpush1.bf16.msra.mxu0 %v1430
        %1789 = vmatprep.subr.bf16.mxu0 0
        %1790 = vmatpush1.bf16.msra.mxu0 %v1427
        %1791 = vmatprep.subr.bf16.mxu0 0
        %1792 = vmatpush1.bf16.msra.mxu0 %v1424
        %1793 = vmatprep.subr.bf16.mxu0 0
        %1794 = vmatpush1.bf16.msra.mxu0 %v1421
        %1795 = vmatprep.subr.bf16.mxu0 0
        %1796 = vmatpush1.bf16.msra.mxu0 %v1418
        %1797 = vmatprep.subr.bf16.mxu0 0
        %1798 = vmatpush1.bf16.msra.mxu0 %v1415
        %1799 = vmatprep.subr.bf16.mxu0 0
        %1800 = vmatpush2.bf16.msra.mxu0 %v1460
        %1801 = vmatprep.subr.bf16.mxu0 0
        %1802 = vmatpush2.bf16.msra.mxu0 %v1457
        %1803 = vmatprep.subr.bf16.mxu0 0
        %1804 = vmatpush2.bf16.msra.mxu0 %v1454
        %1805 = vmatprep.subr.bf16.mxu0 0
        %1806 = vmatpush2.bf16.msra.mxu0 %v1451
        %1807 = vmatprep.subr.bf16.mxu0 0
        %1808 = vmatpush2.bf16.msra.mxu0 %v1448
        %1809 = vmatprep.subr.bf16.mxu0 0
        %1810 = vmatpush2.bf16.msra.mxu0 %v1445
        %1811 = vmatprep.subr.bf16.mxu0 0
        %1812 = vmatpush2.bf16.msra.mxu0 %v1442
        %1813 = vmatprep.subr.bf16.mxu0 0
        %1814 = vmatpush2.bf16.msra.mxu0 %v1439
        %1815 = vmatprep.mubr.bf16.mxu0 %v1037
        %1816 = vmatmul.mubr.bf16.gmra.mxu0 %v1036
        %v1817 = vpop.f32.mrf.mxu0
        %v1818 = vadd.f32 %v1169, %v1817
        %v1819 = vpop.f32.mrf.mxu0
        %v1820 = vpop.f32.mrf.mxu0
        %v1821 = vadd.f32 %v1169, %v1820
        %v1822 = vpop.f32.mrf.mxu0
        %1823 = vmatprep.mubr.bf16.mxu0 %v1040
        %1824 = vmatmul.mubr.bf16.gmra.mxu0 %v1039
        %v1825 = vpop.f32.mrf.mxu0
        %v1826 = vadd.f32 %v1169, %v1825
        %v1827 = vpop.f32.mrf.mxu0
        %v1828 = vpop.f32.mrf.mxu0
        %v1829 = vadd.f32 %v1169, %v1828
        %v1830 = vpop.f32.mrf.mxu0
        %1831 = vmatprep.mubr.bf16.mxu0 %v1043
        %1832 = vmatmul.mubr.bf16.gmra.mxu0 %v1042
        %v1833 = vpop.f32.mrf.mxu0
        %v1834 = vadd.f32 %v1169, %v1833
        %v1835 = vpop.f32.mrf.mxu0
        %v1836 = vpop.f32.mrf.mxu0
        %v1837 = vadd.f32 %v1169, %v1836
        %v1838 = vpop.f32.mrf.mxu0
        %1839 = vmatprep.mubr.bf16.mxu0 %v1046
        %1840 = vmatmul.mubr.bf16.gmra.mxu0 %v1045
        %v1841 = vpop.f32.mrf.mxu0
        %v1842 = vadd.f32 %v1169, %v1841
        %v1843 = vpop.f32.mrf.mxu0
        %v1844 = vpop.f32.mrf.mxu0
        %v1845 = vadd.f32 %v1169, %v1844
        %v1846 = vpop.f32.mrf.mxu0
        %1847 = vmatprep.mubr.bf16.mxu0 %v1049
        %1848 = vmatmul.mubr.bf16.gmra.mxu0 %v1048
        %v1849 = vpop.f32.mrf.mxu0
        %v1850 = vadd.f32 %v1169, %v1849
        %v1851 = vpop.f32.mrf.mxu0
        %v1852 = vpop.f32.mrf.mxu0
        %v1853 = vadd.f32 %v1169, %v1852
        %v1854 = vpop.f32.mrf.mxu0
        %1855 = vmatprep.mubr.bf16.mxu0 %v1052
        %1856 = vmatmul.mubr.bf16.gmra.mxu0 %v1051
        %v1857 = vpop.f32.mrf.mxu0
        %v1858 = vadd.f32 %v1169, %v1857
        %v1859 = vpop.f32.mrf.mxu0
        %v1860 = vpop.f32.mrf.mxu0
        %v1861 = vadd.f32 %v1169, %v1860
        %v1862 = vpop.f32.mrf.mxu0
        %1863 = vmatprep.mubr.bf16.mxu0 %v1055
        %1864 = vmatmul.mubr.bf16.gmra.mxu0 %v1054
        %v1865 = vpop.f32.mrf.mxu0
        %v1866 = vadd.f32 %v1169, %v1865
        %v1867 = vpop.f32.mrf.mxu0
        %v1868 = vpop.f32.mrf.mxu0
        %v1869 = vadd.f32 %v1169, %v1868
        %v1870 = vpop.f32.mrf.mxu0
        %1871 = vmatprep.mubr.bf16.mxu0 %v1058
        %1872 = vmatmul.mubr.bf16.gmra.mxu0 %v1057
        %v1873 = vpop.f32.mrf.mxu0
        %v1874 = vadd.f32 %v1169, %v1873
        %v1875 = vpop.f32.mrf.mxu0
        %v1876 = vpop.f32.mrf.mxu0
        %v1877 = vadd.f32 %v1169, %v1876
        %v1878 = vpop.f32.mrf.mxu0
        %1879 = vdwg.mxu0
        %1880 = vmatprep.subr.bf16.mxu0 0
        %1881 = vmatpush1.bf16.msra.mxu0 %v1484
        %1882 = vmatprep.subr.bf16.mxu0 0
        %1883 = vmatpush1.bf16.msra.mxu0 %v1481
        %1884 = vmatprep.subr.bf16.mxu0 0
        %1885 = vmatpush1.bf16.msra.mxu0 %v1478
        %1886 = vmatprep.subr.bf16.mxu0 0
        %1887 = vmatpush1.bf16.msra.mxu0 %v1475
        %1888 = vmatprep.subr.bf16.mxu0 0
        %1889 = vmatpush1.bf16.msra.mxu0 %v1472
        %1890 = vmatprep.subr.bf16.mxu0 0
        %1891 = vmatpush1.bf16.msra.mxu0 %v1469
        %1892 = vmatprep.subr.bf16.mxu0 0
        %1893 = vmatpush1.bf16.msra.mxu0 %v1466
        %1894 = vmatprep.subr.bf16.mxu0 0
        %1895 = vmatpush1.bf16.msra.mxu0 %v1463
        %1896 = vmatprep.subr.bf16.mxu0 0
        %1897 = vmatpush2.bf16.msra.mxu0 0
        %1898 = vmatprep.subr.bf16.mxu0 0
        %1899 = vmatpush2.bf16.msra.mxu0 0
        %1900 = vmatprep.subr.bf16.mxu0 0
        %1901 = vmatpush2.bf16.msra.mxu0 0
        %1902 = vmatprep.subr.bf16.mxu0 0
        %1903 = vmatpush2.bf16.msra.mxu0 0
        %1904 = vmatprep.subr.bf16.mxu0 0
        %1905 = vmatpush2.bf16.msra.mxu0 0
        %1906 = vmatprep.subr.bf16.mxu0 0
        %1907 = vmatpush2.bf16.msra.mxu0 0
        %1908 = vmatprep.subr.bf16.mxu0 0
        %1909 = vmatpush2.bf16.msra.mxu0 0
        %1910 = vmatprep.subr.bf16.mxu0 0
        %1911 = vmatpush2.bf16.msra.mxu0 0
        %1912 = vmatprep.mubr.bf16.mxu0 0
        %1913 = vmatmul.mubr.bf16.gmra.mxu0 %v1038
        %v1914 = vpop.f32.mrf.mxu0
        %v1915 = vadd.f32 %v1818, %v1914
        %v1916 = vpop.f32.mrf.mxu0
        %v1917 = vpop.f32.mrf.mxu0
        %v1918 = vadd.f32 %v1821, %v1917
        %v1919 = vpop.f32.mrf.mxu0
        %1920 = vmatprep.mubr.bf16.mxu0 0
        %1921 = vmatmul.mubr.bf16.gmra.mxu0 %v1041
        %v1922 = vpop.f32.mrf.mxu0
        %v1923 = vadd.f32 %v1826, %v1922
        %v1924 = vpop.f32.mrf.mxu0
        %v1925 = vpop.f32.mrf.mxu0
        %v1926 = vadd.f32 %v1829, %v1925
        %v1927 = vpop.f32.mrf.mxu0
        %1928 = vmatprep.mubr.bf16.mxu0 0
        %1929 = vmatmul.mubr.bf16.gmra.mxu0 %v1044
        %v1930 = vpop.f32.mrf.mxu0
        %v1931 = vadd.f32 %v1834, %v1930
        %v1932 = vpop.f32.mrf.mxu0
        %v1933 = vpop.f32.mrf.mxu0
        %v1934 = vadd.f32 %v1837, %v1933
        %v1935 = vpop.f32.mrf.mxu0
        %1936 = vmatprep.mubr.bf16.mxu0 0
        %1937 = vmatmul.mubr.bf16.gmra.mxu0 %v1047
        %v1938 = vpop.f32.mrf.mxu0
        %v1939 = vadd.f32 %v1842, %v1938
        %v1940 = vpop.f32.mrf.mxu0
        %v1941 = vpop.f32.mrf.mxu0
        %v1942 = vadd.f32 %v1845, %v1941
        %v1943 = vpop.f32.mrf.mxu0
        %1944 = vmatprep.mubr.bf16.mxu0 0
        %1945 = vmatmul.mubr.bf16.gmra.mxu0 %v1050
        %v1946 = vpop.f32.mrf.mxu0
        %v1947 = vadd.f32 %v1850, %v1946
        %v1948 = vpop.f32.mrf.mxu0
        %v1949 = vpop.f32.mrf.mxu0
        %v1950 = vadd.f32 %v1853, %v1949
        %v1951 = vpop.f32.mrf.mxu0
        %1952 = vmatprep.mubr.bf16.mxu0 0
        %1953 = vmatmul.mubr.bf16.gmra.mxu0 %v1053
        %v1954 = vpop.f32.mrf.mxu0
        %v1955 = vadd.f32 %v1858, %v1954
        %v1956 = vpop.f32.mrf.mxu0
        %v1957 = vpop.f32.mrf.mxu0
        %v1958 = vadd.f32 %v1861, %v1957
        %v1959 = vpop.f32.mrf.mxu0
        %1960 = vmatprep.mubr.bf16.mxu0 0
        %1961 = vmatmul.mubr.bf16.gmra.mxu0 %v1056
        %v1962 = vpop.f32.mrf.mxu0
        %v1963 = vadd.f32 %v1866, %v1962
        %v1964 = vpop.f32.mrf.mxu0
        %v1965 = vpop.f32.mrf.mxu0
        %v1966 = vadd.f32 %v1869, %v1965
        %v1967 = vpop.f32.mrf.mxu0
        %1968 = vmatprep.mubr.bf16.mxu0 0
        %1969 = vmatmul.mubr.bf16.gmra.mxu0 %v1059
        %v1970 = vpop.f32.mrf.mxu0
        %v1971 = vadd.f32 %v1874, %v1970
        %v1972 = vpop.f32.mrf.mxu0
        %v1973 = vpop.f32.mrf.mxu0
        %v1974 = vadd.f32 %v1877, %v1973
        %v1975 = vpop.f32.mrf.mxu0
        %1976 = vdwg.mxu0
        %v1977 = vmax.f32 %v1705, 0.0
        %v1978 = vmax.f32 %v1707, 0.0
        %v1979 = vmax.f32 %v1915, 0.0
        %v1980 = vmax.f32 %v1709, 0.0
        %v1981 = vmax.f32 %v1711, 0.0
        %v1982 = vmax.f32 %v1918, 0.0
        %v1983 = vmax.f32 %v1715, 0.0
        %v1984 = vmax.f32 %v1717, 0.0
        %v1985 = vmax.f32 %v1923, 0.0
        %v1986 = vmax.f32 %v1719, 0.0
        %v1987 = vmax.f32 %v1721, 0.0
        %v1988 = vmax.f32 %v1926, 0.0
        %v1989 = vmax.f32 %v1725, 0.0
        %v1990 = vmax.f32 %v1727, 0.0
        %v1991 = vmax.f32 %v1931, 0.0
        %v1992 = vmax.f32 %v1729, 0.0
        %v1993 = vmax.f32 %v1731, 0.0
        %v1994 = vmax.f32 %v1934, 0.0
        %v1995 = vmax.f32 %v1735, 0.0
        %v1996 = vmax.f32 %v1737, 0.0
        %v1997 = vmax.f32 %v1939, 0.0
        %v1998 = vmax.f32 %v1739, 0.0
        %v1999 = vmax.f32 %v1741, 0.0
        %v2000 = vmax.f32 %v1942, 0.0
        %v2001 = vmax.f32 %v1745, 0.0
        %v2002 = vmax.f32 %v1747, 0.0
        %v2003 = vmax.f32 %v1947, 0.0
        %v2004 = vmax.f32 %v1749, 0.0
        %v2005 = vmax.f32 %v1751, 0.0
        %v2006 = vmax.f32 %v1950, 0.0
        %v2007 = vmax.f32 %v1755, 0.0
        %v2008 = vmax.f32 %v1757, 0.0
        %v2009 = vmax.f32 %v1955, 0.0
        %v2010 = vmax.f32 %v1759, 0.0
        %v2011 = vmax.f32 %v1761, 0.0
        %v2012 = vmax.f32 %v1958, 0.0
        %v2013 = vmax.f32 %v1765, 0.0
        %v2014 = vmax.f32 %v1767, 0.0
        %v2015 = vmax.f32 %v1963, 0.0
        %v2016 = vmax.f32 %v1769, 0.0
        %v2017 = vmax.f32 %v1771, 0.0
        %v2018 = vmax.f32 %v1966, 0.0
        %v2019 = vmax.f32 %v1775, 0.0
        %v2020 = vmax.f32 %v1777, 0.0
        %v2021 = vmax.f32 %v1971, 0.0
        %v2022 = vmax.f32 %v1779, 0.0
        %v2023 = vmax.f32 %v1781, 0.0
        %v2024 = vmax.f32 %v1974, 0.0
        %v2025 = vpack.c.bf16 %v1980, %v1977
        %v2026 = vpack.c.bf16 %v1981, %v1978
        %v2027 = vpack.c.bf16 %v1982, %v1979
        %v2028 = vpack.c.bf16 %v1986, %v1983
        %v2029 = vpack.c.bf16 %v1987, %v1984
        %v2030 = vpack.c.bf16 %v1988, %v1985
        %v2031 = vpack.c.bf16 %v1992, %v1989
        %v2032 = vpack.c.bf16 %v1993, %v1990
        %v2033 = vpack.c.bf16 %v1994, %v1991
        %v2034 = vpack.c.bf16 %v1998, %v1995
        %v2035 = vpack.c.bf16 %v1999, %v1996
        %v2036 = vpack.c.bf16 %v2000, %v1997
        %v2037 = vpack.c.bf16 %v2004, %v2001
        %v2038 = vpack.c.bf16 %v2005, %v2002
        %v2039 = vpack.c.bf16 %v2006, %v2003
        %v2040 = vpack.c.bf16 %v2010, %v2007
        %v2041 = vpack.c.bf16 %v2011, %v2008
        %v2042 = vpack.c.bf16 %v2012, %v2009
        %v2043 = vpack.c.bf16 %v2016, %v2013
        %v2044 = vpack.c.bf16 %v2017, %v2014
        %v2045 = vpack.c.bf16 %v2018, %v2015
        %v2046 = vpack.c.bf16 %v2022, %v2019
        %v2047 = vpack.c.bf16 %v2023, %v2020
        %v2048 = vpack.c.bf16 %v2024, %v2021
        %v2049 = vld [vmem:[#allocation8] sm:$0xf]
        %v2050 = vld [vmem:[#allocation8 + $0x4] sm:$0xf]
        %v2051 = vld [vmem:[#allocation8 + $0x8] sm:$0xf]
        %v2052 = vld [vmem:[#allocation8 + $0xc] sm:$0xf]
        %v2053 = vld [vmem:[#allocation8 + $0x10] sm:$0xf]
        %v2054 = vld [vmem:[#allocation8 + $0x14] sm:$0xf]
        %v2055 = vld [vmem:[#allocation8 + $0x18] sm:$0xf]
        %v2056 = vld [vmem:[#allocation8 + $0x1c] sm:$0xf]
        %v2057 = vld [vmem:[#allocation8 + $0x20] sm:$0xf]
        %v2058 = vld [vmem:[#allocation8 + $0x24] sm:$0xf]
        %v2059 = vld [vmem:[#allocation8 + $0x28] sm:$0xf]
        %v2060 = vld [vmem:[#allocation8 + $0x2c] sm:$0xf]
        %v2061 = vld [vmem:[#allocation8 + $0x30] sm:$0xf]
        %v2062 = vld [vmem:[#allocation8 + $0x34] sm:$0xf]
        %v2063 = vld [vmem:[#allocation8 + $0x38] sm:$0xf]
        %v2064 = vld [vmem:[#allocation8 + $0x3c] sm:$0xf]
        %v2065 = vld [vmem:[#allocation8 + $0x40] sm:$0xf]
        %v2066 = vld [vmem:[#allocation8 + $0x44] sm:$0xf]
        %v2067 = vld [vmem:[#allocation8 + $0x48] sm:$0xf]
        %v2068 = vld [vmem:[#allocation8 + $0x4c] sm:$0xf]
        %v2069 = vld [vmem:[#allocation8 + $0x50] sm:$0xf]
        %v2070 = vld [vmem:[#allocation8 + $0x54] sm:$0xf]
        %v2071 = vld [vmem:[#allocation8 + $0x58] sm:$0xf]
        %v2072 = vld [vmem:[#allocation8 + $0x5c] sm:$0xf]
        %v2073 = vld [vmem:[#allocation8 + $0x60] sm:$0xf]
        %v2074 = vld [vmem:[#allocation8 + $0x64] sm:$0xf]
        %v2075 = vld [vmem:[#allocation8 + $0x68] sm:$0xf]
        %v2076 = vld [vmem:[#allocation8 + $0x6c] sm:$0xf]
        %v2077 = vld [vmem:[#allocation8 + $0x70] sm:$0xf]
        %v2078 = vld [vmem:[#allocation8 + $0x74] sm:$0xf]
        %v2079 = vld [vmem:[#allocation8 + $0x78] sm:$0xf]
        %v2080 = vld [vmem:[#allocation8 + $0x7c] sm:$0xf]
        %v2081 = vld [vmem:[#allocation8 + $0x80] sm:$0xf]
        %v2082 = vld [vmem:[#allocation8 + $0x84] sm:$0xf]
        %v2083 = vld [vmem:[#allocation8 + $0x88] sm:$0xf]
        %v2084 = vld [vmem:[#allocation8 + $0x8c] sm:$0xf]
        %v2085 = vld [vmem:[#allocation8 + $0x90] sm:$0xf]
        %v2086 = vld [vmem:[#allocation8 + $0x94] sm:$0xf]
        %v2087 = vld [vmem:[#allocation8 + $0x98] sm:$0xf]
        %v2088 = vld [vmem:[#allocation8 + $0x9c] sm:$0xf]
        %v2089 = vld [vmem:[#allocation8 + $0xa0] sm:$0xf]
        %v2090 = vld [vmem:[#allocation8 + $0xa4] sm:$0xf]
        %v2091 = vld [vmem:[#allocation8 + $0xa8] sm:$0xf]
        %v2092 = vld [vmem:[#allocation8 + $0xac] sm:$0xf]
        %v2093 = vld [vmem:[#allocation8 + $0xb0] sm:$0xf]
        %v2094 = vld [vmem:[#allocation8 + $0xb4] sm:$0xf]
        %v2095 = vld [vmem:[#allocation8 + $0xb8] sm:$0xf]
        %v2096 = vld [vmem:[#allocation8 + $0xbc] sm:$0xf]
        %v2097 = vld [vmem:[%s6] sm:$0x1]
        %v2099 = vlaneseq
        %v2100 = vshrl.u32 %v2099, 7
        %v2101 = vsub.s32 0, %v2100
        %v2102 = vrot.slane %v2097, %v2101
        %v2152 = vunpack.c.l.b16 %v2049
        %v2153 = vunpack.c.l.b16 %v2050
        %v2154 = vunpack.c.l.b16 %v2051
        %v2155 = vunpack.c.l.b16 %v2052
        %v2156 = vunpack.c.l.b16 %v2053
        %v2157 = vunpack.c.l.b16 %v2054
        %v2158 = vunpack.c.l.b16 %v2055
        %v2159 = vunpack.c.l.b16 %v2056
        %v2160 = vunpack.c.l.b16 %v2057
        %v2161 = vunpack.c.l.b16 %v2058
        %v2162 = vunpack.c.l.b16 %v2059
        %v2163 = vunpack.c.l.b16 %v2060
        %v2164 = vunpack.c.l.b16 %v2061
        %v2165 = vunpack.c.l.b16 %v2062
        %v2166 = vunpack.c.l.b16 %v2063
        %v2167 = vunpack.c.l.b16 %v2064
        %v2168 = vunpack.c.l.b16 %v2065
        %v2169 = vunpack.c.l.b16 %v2066
        %v2170 = vunpack.c.l.b16 %v2067
        %v2171 = vunpack.c.l.b16 %v2068
        %v2172 = vunpack.c.l.b16 %v2069
        %v2173 = vunpack.c.l.b16 %v2070
        %v2174 = vunpack.c.l.b16 %v2071
        %v2175 = vunpack.c.l.b16 %v2072
        %v2176 = vunpack.c.l.b16 %v2073
        %v2177 = vunpack.c.l.b16 %v2074
        %v2178 = vunpack.c.l.b16 %v2075
        %v2179 = vunpack.c.l.b16 %v2076
        %v2180 = vunpack.c.l.b16 %v2077
        %v2181 = vunpack.c.l.b16 %v2078
        %v2182 = vunpack.c.l.b16 %v2079
        %v2183 = vunpack.c.l.b16 %v2080
        %v2184 = vunpack.c.l.b16 %v2081
        %v2185 = vunpack.c.l.b16 %v2082
        %v2186 = vunpack.c.l.b16 %v2083
        %v2187 = vunpack.c.l.b16 %v2084
        %v2188 = vunpack.c.l.b16 %v2085
        %v2189 = vunpack.c.l.b16 %v2086
        %v2190 = vunpack.c.l.b16 %v2087
        %v2191 = vunpack.c.l.b16 %v2088
        %v2192 = vunpack.c.l.b16 %v2089
        %v2193 = vunpack.c.l.b16 %v2090
        %v2194 = vunpack.c.l.b16 %v2091
        %v2195 = vunpack.c.l.b16 %v2092
        %v2196 = vunpack.c.l.b16 %v2093
        %v2197 = vunpack.c.l.b16 %v2094
        %v2198 = vunpack.c.l.b16 %v2095
        %v2199 = vunpack.c.l.b16 %v2096
        %v2200 = vpack.c.b16 %v2153, %v2152
        %v2201 = vpack.c.b16 %v2155, %v2154
        %v2202 = vpack.c.b16 %v2157, %v2156
        %v2203 = vpack.c.b16 %v2159, %v2158
        %v2204 = vpack.c.b16 %v2161, %v2160
        %v2205 = vpack.c.b16 %v2163, %v2162
        %v2206 = vpack.c.b16 %v2165, %v2164
        %v2207 = vpack.c.b16 %v2167, %v2166
        %v2208 = vpack.c.b16 %v2169, %v2168
        %v2209 = vpack.c.b16 %v2171, %v2170
        %v2210 = vpack.c.b16 %v2173, %v2172
        %v2211 = vpack.c.b16 %v2175, %v2174
        %v2212 = vpack.c.b16 %v2177, %v2176
        %v2213 = vpack.c.b16 %v2179, %v2178
        %v2214 = vpack.c.b16 %v2181, %v2180
        %v2215 = vpack.c.b16 %v2183, %v2182
        %v2216 = vpack.c.b16 %v2185, %v2184
        %v2217 = vpack.c.b16 %v2187, %v2186
        %v2218 = vpack.c.b16 %v2189, %v2188
        %v2219 = vpack.c.b16 %v2191, %v2190
        %v2220 = vpack.c.b16 %v2193, %v2192
        %v2221 = vpack.c.b16 %v2195, %v2194
        %v2222 = vpack.c.b16 %v2197, %v2196
        %v2223 = vpack.c.b16 %v2199, %v2198
        %2248 = vmatprep.subr.bf16.mxu0 0
        %2249 = vmatpush1.bf16.msra.mxu0 %v2207
        %2250 = vmatprep.subr.bf16.mxu0 0
        %2251 = vmatpush1.bf16.msra.mxu0 %v2206
        %2252 = vmatprep.subr.bf16.mxu0 0
        %2253 = vmatpush1.bf16.msra.mxu0 %v2205
        %2254 = vmatprep.subr.bf16.mxu0 0
        %2255 = vmatpush1.bf16.msra.mxu0 %v2204
        %2256 = vmatprep.subr.bf16.mxu0 0
        %2257 = vmatpush1.bf16.msra.mxu0 %v2203
        %2258 = vmatprep.subr.bf16.mxu0 0
        %2259 = vmatpush1.bf16.msra.mxu0 %v2202
        %2260 = vmatprep.subr.bf16.mxu0 0
        %2261 = vmatpush1.bf16.msra.mxu0 %v2201
        %2262 = vmatprep.subr.bf16.mxu0 0
        %2263 = vmatpush1.bf16.msra.mxu0 %v2200
        %2264 = vmatprep.subr.bf16.mxu0 0
        %2265 = vmatpush2.bf16.msra.mxu0 %v2215
        %2266 = vmatprep.subr.bf16.mxu0 0
        %2267 = vmatpush2.bf16.msra.mxu0 %v2214
        %2268 = vmatprep.subr.bf16.mxu0 0
        %2269 = vmatpush2.bf16.msra.mxu0 %v2213
        %2270 = vmatprep.subr.bf16.mxu0 0
        %2271 = vmatpush2.bf16.msra.mxu0 %v2212
        %2272 = vmatprep.subr.bf16.mxu0 0
        %2273 = vmatpush2.bf16.msra.mxu0 %v2211
        %2274 = vmatprep.subr.bf16.mxu0 0
        %2275 = vmatpush2.bf16.msra.mxu0 %v2210
        %2276 = vmatprep.subr.bf16.mxu0 0
        %2277 = vmatpush2.bf16.msra.mxu0 %v2209
        %2278 = vmatprep.subr.bf16.mxu0 0
        %2279 = vmatpush2.bf16.msra.mxu0 %v2208
        %2280 = vmatprep.mubr.bf16.mxu0 %v2026
        %2281 = vmatmul.mubr.bf16.gmra.mxu0 %v2025
        %v2282 = vpop.f32.mrf.mxu0
        %v2283 = vadd.f32 %v2102, %v2282
        %v2284 = vpop.f32.mrf.mxu0
        %v2285 = vpop.f32.mrf.mxu0
        %v2286 = vadd.f32 %v2102, %v2285
        %v2287 = vpop.f32.mrf.mxu0
        %2288 = vmatprep.mubr.bf16.mxu0 %v2029
        %2289 = vmatmul.mubr.bf16.gmra.mxu0 %v2028
        %v2290 = vpop.f32.mrf.mxu0
        %v2291 = vadd.f32 %v2102, %v2290
        %v2292 = vpop.f32.mrf.mxu0
        %v2293 = vpop.f32.mrf.mxu0
        %v2294 = vadd.f32 %v2102, %v2293
        %v2295 = vpop.f32.mrf.mxu0
        %2296 = vmatprep.mubr.bf16.mxu0 %v2032
        %2297 = vmatmul.mubr.bf16.gmra.mxu0 %v2031
        %v2298 = vpop.f32.mrf.mxu0
        %v2299 = vadd.f32 %v2102, %v2298
        %v2300 = vpop.f32.mrf.mxu0
        %v2301 = vpop.f32.mrf.mxu0
        %v2302 = vadd.f32 %v2102, %v2301
        %v2303 = vpop.f32.mrf.mxu0
        %2304 = vmatprep.mubr.bf16.mxu0 %v2035
        %2305 = vmatmul.mubr.bf16.gmra.mxu0 %v2034
        %v2306 = vpop.f32.mrf.mxu0
        %v2307 = vadd.f32 %v2102, %v2306
        %v2308 = vpop.f32.mrf.mxu0
        %v2309 = vpop.f32.mrf.mxu0
        %v2310 = vadd.f32 %v2102, %v2309
        %v2311 = vpop.f32.mrf.mxu0
        %2312 = vmatprep.mubr.bf16.mxu0 %v2038
        %2313 = vmatmul.mubr.bf16.gmra.mxu0 %v2037
        %v2314 = vpop.f32.mrf.mxu0
        %v2315 = vadd.f32 %v2102, %v2314
        %v2316 = vpop.f32.mrf.mxu0
        %v2317 = vpop.f32.mrf.mxu0
        %v2318 = vadd.f32 %v2102, %v2317
        %v2319 = vpop.f32.mrf.mxu0
        %2320 = vmatprep.mubr.bf16.mxu0 %v2041
        %2321 = vmatmul.mubr.bf16.gmra.mxu0 %v2040
        %v2322 = vpop.f32.mrf.mxu0
        %v2323 = vadd.f32 %v2102, %v2322
        %v2324 = vpop.f32.mrf.mxu0
        %v2325 = vpop.f32.mrf.mxu0
        %v2326 = vadd.f32 %v2102, %v2325
        %v2327 = vpop.f32.mrf.mxu0
        %2328 = vmatprep.mubr.bf16.mxu0 %v2044
        %2329 = vmatmul.mubr.bf16.gmra.mxu0 %v2043
        %v2330 = vpop.f32.mrf.mxu0
        %v2331 = vadd.f32 %v2102, %v2330
        %v2332 = vpop.f32.mrf.mxu0
        %v2333 = vpop.f32.mrf.mxu0
        %v2334 = vadd.f32 %v2102, %v2333
        %v2335 = vpop.f32.mrf.mxu0
        %2336 = vmatprep.mubr.bf16.mxu0 %v2047
        %2337 = vmatmul.mubr.bf16.gmra.mxu0 %v2046
        %v2338 = vpop.f32.mrf.mxu0
        %v2339 = vadd.f32 %v2102, %v2338
        %v2340 = vpop.f32.mrf.mxu0
        %v2341 = vpop.f32.mrf.mxu0
        %v2342 = vadd.f32 %v2102, %v2341
        %v2343 = vpop.f32.mrf.mxu0
        %2344 = vdwg.mxu0
        %2345 = vmatprep.subr.bf16.mxu0 0
        %2346 = vmatpush1.bf16.msra.mxu0 %v2223
        %2347 = vmatprep.subr.bf16.mxu0 0
        %2348 = vmatpush1.bf16.msra.mxu0 %v2222
        %2349 = vmatprep.subr.bf16.mxu0 0
        %2350 = vmatpush1.bf16.msra.mxu0 %v2221
        %2351 = vmatprep.subr.bf16.mxu0 0
        %2352 = vmatpush1.bf16.msra.mxu0 %v2220
        %2353 = vmatprep.subr.bf16.mxu0 0
        %2354 = vmatpush1.bf16.msra.mxu0 %v2219
        %2355 = vmatprep.subr.bf16.mxu0 0
        %2356 = vmatpush1.bf16.msra.mxu0 %v2218
        %2357 = vmatprep.subr.bf16.mxu0 0
        %2358 = vmatpush1.bf16.msra.mxu0 %v2217
        %2359 = vmatprep.subr.bf16.mxu0 0
        %2360 = vmatpush1.bf16.msra.mxu0 %v2216
        %2361 = vmatprep.subr.bf16.mxu0 0
        %2362 = vmatpush2.bf16.msra.mxu0 0
        %2363 = vmatprep.subr.bf16.mxu0 0
        %2364 = vmatpush2.bf16.msra.mxu0 0
        %2365 = vmatprep.subr.bf16.mxu0 0
        %2366 = vmatpush2.bf16.msra.mxu0 0
        %2367 = vmatprep.subr.bf16.mxu0 0
        %2368 = vmatpush2.bf16.msra.mxu0 0
        %2369 = vmatprep.subr.bf16.mxu0 0
        %2370 = vmatpush2.bf16.msra.mxu0 0
        %2371 = vmatprep.subr.bf16.mxu0 0
        %2372 = vmatpush2.bf16.msra.mxu0 0
        %2373 = vmatprep.subr.bf16.mxu0 0
        %2374 = vmatpush2.bf16.msra.mxu0 0
        %2375 = vmatprep.subr.bf16.mxu0 0
        %2376 = vmatpush2.bf16.msra.mxu0 0
        %2377 = vmatprep.mubr.bf16.mxu0 0
        %2378 = vmatmul.mubr.bf16.gmra.mxu0 %v2027
        %v2379 = vpop.f32.mrf.mxu0
        %v2380 = vadd.f32 %v2283, %v2379
        %v2381 = vpop.f32.mrf.mxu0
        %v2382 = vpop.f32.mrf.mxu0
        %v2383 = vadd.f32 %v2286, %v2382
        %v2384 = vpop.f32.mrf.mxu0
        %2385 = vmatprep.mubr.bf16.mxu0 0
        %2386 = vmatmul.mubr.bf16.gmra.mxu0 %v2030
        %v2387 = vpop.f32.mrf.mxu0
        %v2388 = vadd.f32 %v2291, %v2387
        %v2389 = vpop.f32.mrf.mxu0
        %v2390 = vpop.f32.mrf.mxu0
        %v2391 = vadd.f32 %v2294, %v2390
        %v2392 = vpop.f32.mrf.mxu0
        %2393 = vmatprep.mubr.bf16.mxu0 0
        %2394 = vmatmul.mubr.bf16.gmra.mxu0 %v2033
        %v2395 = vpop.f32.mrf.mxu0
        %v2396 = vadd.f32 %v2299, %v2395
        %v2397 = vpop.f32.mrf.mxu0
        %v2398 = vpop.f32.mrf.mxu0
        %v2399 = vadd.f32 %v2302, %v2398
        %v2400 = vpop.f32.mrf.mxu0
        %2401 = vmatprep.mubr.bf16.mxu0 0
        %2402 = vmatmul.mubr.bf16.gmra.mxu0 %v2036
        %v2403 = vpop.f32.mrf.mxu0
        %v2404 = vadd.f32 %v2307, %v2403
        %v2405 = vpop.f32.mrf.mxu0
        %v2406 = vpop.f32.mrf.mxu0
        %v2407 = vadd.f32 %v2310, %v2406
        %v2408 = vpop.f32.mrf.mxu0
        %2409 = vmatprep.mubr.bf16.mxu0 0
        %2410 = vmatmul.mubr.bf16.gmra.mxu0 %v2039
        %v2411 = vpop.f32.mrf.mxu0
        %v2412 = vadd.f32 %v2315, %v2411
        %v2413 = vpop.f32.mrf.mxu0
        %v2414 = vpop.f32.mrf.mxu0
        %v2415 = vadd.f32 %v2318, %v2414
        %v2416 = vpop.f32.mrf.mxu0
        %2417 = vmatprep.mubr.bf16.mxu0 0
        %2418 = vmatmul.mubr.bf16.gmra.mxu0 %v2042
        %v2419 = vpop.f32.mrf.mxu0
        %v2420 = vadd.f32 %v2323, %v2419
        %v2421 = vpop.f32.mrf.mxu0
        %v2422 = vpop.f32.mrf.mxu0
        %v2423 = vadd.f32 %v2326, %v2422
        %v2424 = vpop.f32.mrf.mxu0
        %2425 = vmatprep.mubr.bf16.mxu0 0
        %2426 = vmatmul.mubr.bf16.gmra.mxu0 %v2045
        %v2427 = vpop.f32.mrf.mxu0
        %v2428 = vadd.f32 %v2331, %v2427
        %v2429 = vpop.f32.mrf.mxu0
        %v2430 = vpop.f32.mrf.mxu0
        %v2431 = vadd.f32 %v2334, %v2430
        %v2432 = vpop.f32.mrf.mxu0
        %2433 = vmatprep.mubr.bf16.mxu0 0
        %2434 = vmatmul.mubr.bf16.gmra.mxu0 %v2048
        %v2435 = vpop.f32.mrf.mxu0
        %v2436 = vadd.f32 %v2339, %v2435
        %v2437 = vpop.f32.mrf.mxu0
        %v2438 = vpop.f32.mrf.mxu0
        %v2439 = vadd.f32 %v2342, %v2438
        %v2440 = vpop.f32.mrf.mxu0
        %2441 = vdwg.mxu0
        %2442 = vst [vmem:[%s341] sm:$0xff] %v2380
        %2443 = vst [vmem:[%s341 + $0x8] sm:$0xff] %v2383
        %2444 = vst [vmem:[%s341 + $0x10] sm:$0xff] %v2388
        %2445 = vst [vmem:[%s341 + $0x18] sm:$0xff] %v2391
        %2446 = vst [vmem:[%s341 + $0x20] sm:$0xff] %v2396
        %2447 = vst [vmem:[%s341 + $0x28] sm:$0xff] %v2399
        %2448 = vst [vmem:[%s341 + $0x30] sm:$0xff] %v2404
        %2449 = vst [vmem:[%s341 + $0x38] sm:$0xff] %v2407
        %2450 = vst [vmem:[%s341 + $0x40] sm:$0xff] %v2412
        %2451 = vst [vmem:[%s341 + $0x48] sm:$0xff] %v2415
        %2452 = vst [vmem:[%s341 + $0x50] sm:$0xff] %v2420
        %2453 = vst [vmem:[%s341 + $0x58] sm:$0xff] %v2423
        %2454 = vst [vmem:[%s341 + $0x60] sm:$0xff] %v2428
        %2455 = vst [vmem:[%s341 + $0x68] sm:$0xff] %v2431
        %2456 = vst [vmem:[%s341 + $0x70] sm:$0xff] %v2436
        %2457 = vst [vmem:[%s341 + $0x78] sm:$0xff] %v2439
        %s2458 = sand.u32 %s186, 1
        %s2459 = scalar_lea.sflag [#allocation4], %s2458
        %s2460 = sand.u32 %s186, 1
        %s2461 = smul.addr %s2460, 128
        %s2462 = scalar_lea.vmem [#allocation10], %s2461
        // Predicated region
        $region65: #{tpu_custom_call.1} parent=47 // pred_check
          %p2463 = pneg %p196
        $region66: #{tpu_custom_call.1} parent=47 // pred_check_branch
          %2465 = sbr.rel (%p2463) target = $region68
        $region67: #{tpu_custom_call.1} parent=47 // pred_region
          %s2466 = smul.u32 16, %s26
          %s2468 = ssub.s32 2048, 2048
          %2469 = vsyncadd %s2459, %s2468
          %s2470 = smul.addr %s2466, 128
          %s2471 = scalar_lea.hbm %s7, %s2470
          %s2472 = sshll.u32 %s2462, 4
          %s2473 = int_to_ptr.vmem [resolvable:$true] %s2472
          %2478 = dma.vmem_to_hbm [thread:$0]  %s2473, 2048, %s2471, %s2459, 128, 128, 8
        $region68: #{tpu_custom_call.1} parent=47 // pred_fallthru
          _
      $region48: #{tpu_custom_call.1} parent=5 // pred_fallthru
        _
      %p2479 = scmp.le.s32.totalorder 2, %s21
      // Predicated region
      $region69: #{tpu_custom_call.1} parent=5 // pred_check
        %p2480 = pneg %p2479
      $region70: #{tpu_custom_call.1} parent=5 // pred_check_branch
        %2482 = sbr.rel (%p2480) target = $region72
      $region71: #{tpu_custom_call.1} parent=5 // pred_region
        %s2483 = ssub.s32 %s21, 2
        // Predicated region
        $region73: #{tpu_custom_call.1} parent=71 // pred_check
          %p2484 = pneg %p202
        $region74: #{tpu_custom_call.1} parent=71 // pred_check_branch
          %2486 = sbr.rel (%p2484) target = $region76
        $region75: #{tpu_custom_call.1} parent=71 // pred_region
          %s2487 = sand.u32 %s187, 1
          %s2488 = scalar_lea.sflag [#allocation4], %s2487
          %s2489 = sand.u32 %s187, 1
          %s2490 = smul.addr %s2489, 128
          %s2491 = scalar_lea.vmem [#allocation10], %s2490
          %2492 = dma.done %s2488, 2048
        $region76: #{tpu_custom_call.1} parent=71 // pred_fallthru
          _
      $region72: #{tpu_custom_call.1} parent=5 // pred_fallthru
        _
    $region6: #{tpu_custom_call.1} parent=1 // loop_footer
      %s25 = sadd.s32 1, %s21
    $region7: #{tpu_custom_call.1} parent=1 // loop_footer_branch
      %20 = sbr.rel target = $region3
    $region8: #{tpu_custom_call.1} parent=1 // loop_exit
      _
    %2493 = vsyncpa [#allocation3], 1
    %s2494 = scalar_lea.sflag [#allocation3], 1
    %2495 = vsyncpa %s2494, 1
    %2496 = vsyncpa [#allocation6], 1
    %2497 = vsyncpa [#allocation9], 1
    %2498 = vsyncpa [#allocation4], 1
    %s2499 = scalar_lea.sflag [#allocation4], 1
    %2500 = vsyncpa %s2499, 1

</llo_original>
